<compile_context>
chip_gen: v6e
topology: v6e:2x2x1
jax: 0.10.0
libtpu: 0.0.40
codegen_flags: <defaults>
</compile_context>

<pallas_src>
import functools
import math

import jax
import jax.numpy as jnp
from jax.experimental import pallas as pl
from jax.experimental.pallas import tpu as pltpu

CHANNEL = 128          # channel_size fixed by the PyTorch module global
LN_EPS = 1e-5          # torch.nn.LayerNorm default


def _channel_attention_kernel(x_ref, wp_ref, b_ref, g_ref, be_ref, out_ref, *,
                              group):
    """Processes `group` [C, S] slabs: out = LN_c(Wp @ x + b)*gamma + beta + x."""
    wp = wp_ref[...]        # [C, C] bf16 (weights resident across the G slabs)
    bias = b_ref[...]       # [C, 1] f32
    gamma = g_ref[...]      # [C, 1] f32
    beta = be_ref[...]      # [C, 1] f32

    def body(g, carry):
        x = x_ref[g]                                        # [C, S] f32
        # Projection Linear in the native [c, s] layout: channel is the MXU
        # contraction dim, no transposes anywhere.  bf16 operands, f32 accumulate.
        proj = jnp.dot(wp, x.astype(jnp.bfloat16),
                       preferred_element_type=jnp.float32) + bias      # [C, S]
        # LayerNorm over the channel axis (axis 0), single-pass statistics.
        mu = jnp.mean(proj, axis=0, keepdims=True)                     # [1, S]
        msq = jnp.mean(proj * proj, axis=0, keepdims=True)             # [1, S]
        inv = jax.lax.rsqrt(msq - mu * mu + LN_EPS)
        ln = (proj - mu) * inv
        # Dropout(0.3)/Dropout(0.5) eval-mode identities; residual with input x.
        out_ref[g] = ln * gamma + beta + x
        return carry

    jax.lax.fori_loop(0, group, body, 0, unroll=True)


def _pick_group(bo, target=8):
    """Largest divisor of bo that is <= target, preferring >=2 grid steps so both
    v7x TensorCores get work (grid axis is marked 'parallel')."""
    divs = [d for d in range(1, bo + 1) if bo % d == 0 and d <= target]
    g = max(divs)
    if bo // g < 2:
        smaller = [d for d in divs if bo // d >= 2]
        if smaller:
            g = max(smaller)
    return g


def channel_attention_forward(x, params, *, inter=10, sequence_num=None,
                              group=8):
    """Fused forward of channel_attention.  `inter` / `sequence_num` only feed the
    mathematically-dead attention branch (sum_m softmax == 1), so they do not
    affect the output; kept for API compatibility."""
    B, O, C, S = x.shape
    assert C == CHANNEL, f"channel_size is fixed to {CHANNEL} by the module"
    del inter, sequence_num   # dead branch removed (see header comment)

    BO = B * O
    xf = x.reshape(BO, C, S).astype(jnp.float32)
    G = _pick_group(BO, group)
    grid_len = BO // G

    # Projection weights as bf16 (MXU path); per-channel vectors as [C, 1] columns
    # (sublane axis), broadcast along lanes inside the kernel.
    wp = params["p_w"].astype(jnp.bfloat16)                              # [C, C]
    col = lambda v: v.reshape(C, 1).astype(jnp.float32)
    p_b, p_g, p_be = col(params["p_b"]), col(params["p_g"]), col(params["p_beta"])

    cost = pl.CostEstimate(
        flops=BO * (2 * C * C * S + 8 * C * S),
        transcendentals=BO * S,                      # one rsqrt per lane column
        bytes_accessed=2 * BO * C * S * 4 + C * C * 2 + 3 * C * 4,
    )

    kernel = functools.partial(_channel_attention_kernel, group=G)
    const2 = lambda i: (0, 0)
    out = pl.pallas_call(
        kernel,
        out_shape=jax.ShapeDtypeStruct((BO, C, S), jnp.float32),
        grid=(grid_len,),
        in_specs=[
            pl.BlockSpec((G, C, S), lambda i: (i, 0, 0)),   # x slabs
            pl.BlockSpec((C, C), const2),                   # Wp (bf16)
            pl.BlockSpec((C, 1), const2),                   # proj bias
            pl.BlockSpec((C, 1), const2),                   # LN gamma
            pl.BlockSpec((C, 1), const2),                   # LN beta
        ],
        out_specs=pl.BlockSpec((G, C, S), lambda i: (i, 0, 0)),
        compiler_params=pltpu.CompilerParams(
            dimension_semantics=("parallel",)),
        cost_estimate=cost,
    )(xf, wp, p_b, p_g, p_be)
    return out.reshape(B, O, C, S)


def channel_attention_reference(x, params, *, inter, sequence_num=None):
    """Pure-JAX mirror of the literal PyTorch forward (eval-mode dropouts),
    including the mathematically-dead Q/K/pool/softmax branch."""
    B, O, C, S = x.shape
    seq = S if sequence_num is None else sequence_num
    extract = int(seq / inter)
    scale = extract ** 0.5
    E = S // inter

    def ln(y, g=None, b=None):
        mu = jnp.mean(y, axis=-1, keepdims=True)
        var = jnp.mean((y - mu) ** 2, axis=-1, keepdims=True)
        out = (y - mu) / jnp.sqrt(var + LN_EPS)
        return out if g is None else out * g + b

    xt = jnp.transpose(x, (0, 1, 3, 2))                       # b o s c
    temp = ln(xt)
    q = ln(temp @ params["q_w"].T + params["q_b"], params["q_g"], params["q_beta"])
    k = ln(temp @ params["k_w"].T + params["k_b"], params["k_g"], params["k_beta"])
    qc = jnp.transpose(q, (0, 1, 3, 2))                       # b o c s
    kc = jnp.transpose(k, (0, 1, 3, 2))
    qp = qc[..., :E * inter].reshape(B, O, C, E, inter).mean(-1)
    kp = kc[..., :E * inter].reshape(B, O, C, E, inter).mean(-1)
    atten = jnp.einsum('bocs,boms->bocm', qp, kp) / scale
    score = jax.nn.softmax(atten, axis=-1)
    out = jnp.einsum('bocs,bocm->bocs', x, score)             # == x (sum_m == 1)
    out_t = jnp.transpose(out, (0, 1, 3, 2))
    proj = ln(out_t @ params["p_w"].T + params["p_b"], params["p_g"], params["p_beta"])
    proj = jnp.transpose(proj, (0, 1, 3, 2))
    return proj + x


if __name__ == "__main__":
    B, O = 2, 2
    SEQ = 400            # sequence_num (module default)
    INTER = 10           # inter (module default)
    C = CHANNEL

    key = jax.random.PRNGKey(0)
    ks = jax.random.split(key, 4)

    def xavier(k, shape):
        std = math.sqrt(2.0 / (shape[0] + shape[1]))
        return std * jax.random.normal(k, shape, dtype=jnp.float32)

    ones = jnp.ones((C,), jnp.float32)
    zeros = jnp.zeros((C,), jnp.float32)
    # Matches the module init: xavier_normal_ weights, zero biases, LN gamma=1/beta=0.
    params = dict(
        q_w=xavier(ks[0], (C, C)), q_b=zeros, q_g=ones, q_beta=zeros,
        k_w=xavier(ks[1], (C, C)), k_b=zeros, k_g=ones, k_beta=zeros,
        p_w=xavier(ks[2], (C, C)), p_b=zeros, p_g=ones, p_beta=zeros,
    )

    x = jax.random.normal(ks[3], (B, O, C, SEQ), dtype=jnp.float32)

    out = channel_attention_forward(x, params, inter=INTER, sequence_num=SEQ)
    jax.block_until_ready(out)
    assert out.shape == (B, O, C, SEQ)

    ref = channel_attention_reference(x, params, inter=INTER, sequence_num=SEQ)
    max_err = float(jnp.max(jnp.abs(out - ref)))
    assert jnp.allclose(out, ref, atol=5e-2, rtol=5e-2), f"max_err={max_err}"

    print("KERNEL_OK")
</pallas_src>

<mosaic_0001>
module attributes {stable_mosaic.version = 11 : i64} {
  func.func @_channel_attention_kernel(%arg0: i32, %arg1: memref<2x128x400xf32, #tpu.memory_space<vmem>>, %arg2: memref<128x128xbf16, #tpu.memory_space<vmem>>, %arg3: memref<128x1xf32, #tpu.memory_space<vmem>>, %arg4: memref<128x1xf32, #tpu.memory_space<vmem>>, %arg5: memref<128x1xf32, #tpu.memory_space<vmem>>, %arg6: memref<2x128x400xf32, #tpu.memory_space<vmem>>) attributes {dimension_semantics = [#tpu.dimension_semantics<parallel>], iteration_bounds = array<i64: 2>, scalar_prefetch = 0 : i64, scratch_operands = 0 : i64, tpu.core_type = #tpu.core_type<tc>, window_params = [{transform_indices = @transform_0, window_bounds = array<i64: 2, 128, 400>}, {pipeline_mode = #tpu.pipeline_mode<synchronous>, transform_indices = @transform_1, window_bounds = array<i64: 128, 128>}, {pipeline_mode = #tpu.pipeline_mode<synchronous>, transform_indices = @transform_2, window_bounds = array<i64: 128, 1>}, {pipeline_mode = #tpu.pipeline_mode<synchronous>, transform_indices = @transform_3, window_bounds = array<i64: 128, 1>}, {pipeline_mode = #tpu.pipeline_mode<synchronous>, transform_indices = @transform_4, window_bounds = array<i64: 128, 1>}, {transform_indices = @transform_5, window_bounds = array<i64: 2, 128, 400>}]} {
    %c0 = arith.constant 0 : index
    %c0_0 = arith.constant 0 : index
    %0 = vector.load %arg2[%c0, %c0_0] : memref<128x128xbf16, #tpu.memory_space<vmem>>, vector<128x128xbf16>
    %c0_1 = arith.constant 0 : index
    %c0_2 = arith.constant 0 : index
    %1 = vector.load %arg3[%c0_1, %c0_2] : memref<128x1xf32, #tpu.memory_space<vmem>>, vector<128x1xf32>
    %c0_3 = arith.constant 0 : index
    %c0_4 = arith.constant 0 : index
    %2 = vector.load %arg4[%c0_3, %c0_4] : memref<128x1xf32, #tpu.memory_space<vmem>>, vector<128x1xf32>
    %c0_5 = arith.constant 0 : index
    %c0_6 = arith.constant 0 : index
    %3 = vector.load %arg5[%c0_5, %c0_6] : memref<128x1xf32, #tpu.memory_space<vmem>>, vector<128x1xf32>
    %c0_i32 = arith.constant 0 : i32
    %4 = arith.index_cast %c0_i32 : i32 to index
    %c0_7 = arith.constant 0 : index
    %c0_8 = arith.constant 0 : index
    %5 = vector.load %arg1[%4, %c0_7, %c0_8] : memref<2x128x400xf32, #tpu.memory_space<vmem>>, vector<1x128x400xf32>
    %6 = vector.shape_cast %5 : vector<1x128x400xf32> to vector<128x400xf32>
    %7 = arith.truncf %6 : vector<128x400xf32> to vector<128x400xbf16>
    %cst = arith.constant dense<0.000000e+00> : vector<128x400xf32>
    %8 = tpu.matmul %0, %7, %cst {dimension_numbers = #tpu.dot_dimension_numbers<[1], [0], [0], [1], [0, 0, 1, 1], [], []>} : vector<128x128xbf16>, vector<128x400xbf16>, vector<128x400xf32> -> vector<128x400xf32>
    %9 = vector.broadcast %1 : vector<128x1xf32> to vector<128x400xf32>
    %10 = arith.addf %8, %9 : vector<128x400xf32>
    %cst_9 = arith.constant dense<0.000000e+00> : vector<400xf32>
    %11 = vector.multi_reduction <add>, %10, %cst_9 [0] : vector<128x400xf32> to vector<400xf32>
    %12 = vector.shape_cast %11 : vector<400xf32> to vector<1x400xf32>
    %cst_10 = arith.constant 1.280000e+02 : f32
    %13 = vector.broadcast %cst_10 : f32 to vector<1x400xf32>
    %14 = arith.divf %12, %13 : vector<1x400xf32>
    %15 = arith.mulf %10, %10 : vector<128x400xf32>
    %cst_11 = arith.constant dense<0.000000e+00> : vector<400xf32>
    %16 = vector.multi_reduction <add>, %15, %cst_11 [0] : vector<128x400xf32> to vector<400xf32>
    %17 = vector.shape_cast %16 : vector<400xf32> to vector<1x400xf32>
    %cst_12 = arith.constant 1.280000e+02 : f32
    %18 = vector.broadcast %cst_12 : f32 to vector<1x400xf32>
    %19 = arith.divf %17, %18 : vector<1x400xf32>
    %20 = arith.mulf %14, %14 : vector<1x400xf32>
    %21 = arith.subf %19, %20 : vector<1x400xf32>
    %cst_13 = arith.constant 9.99999974E-6 : f32
    %22 = vector.broadcast %cst_13 : f32 to vector<1x400xf32>
    %23 = arith.addf %21, %22 : vector<1x400xf32>
    %24 = math.rsqrt %23 : vector<1x400xf32>
    %25 = vector.broadcast %14 : vector<1x400xf32> to vector<128x400xf32>
    %26 = arith.subf %10, %25 : vector<128x400xf32>
    %27 = vector.broadcast %24 : vector<1x400xf32> to vector<128x400xf32>
    %28 = arith.mulf %26, %27 : vector<128x400xf32>
    %29 = vector.broadcast %2 : vector<128x1xf32> to vector<128x400xf32>
    %30 = arith.mulf %28, %29 : vector<128x400xf32>
    %31 = vector.broadcast %3 : vector<128x1xf32> to vector<128x400xf32>
    %32 = arith.addf %30, %31 : vector<128x400xf32>
    %33 = arith.addf %32, %6 : vector<128x400xf32>
    %34 = arith.index_cast %c0_i32 : i32 to index
    %c0_14 = arith.constant 0 : index
    %c0_15 = arith.constant 0 : index
    %35 = vector.load %arg6[%34, %c0_14, %c0_15] : memref<2x128x400xf32, #tpu.memory_space<vmem>>, vector<1x128x400xf32>
    %36 = vector.shape_cast %35 : vector<1x128x400xf32> to vector<128x400xf32>
    %37 = vector.shape_cast %33 : vector<128x400xf32> to vector<1x128x400xf32>
    tpu.vector_store %arg6[%34, %c0_14, %c0_15], %37 {strides = array<i32>} : memref<2x128x400xf32, #tpu.memory_space<vmem>>, vector<1x128x400xf32>,
    %c1_i32 = arith.constant 1 : i32
    %38 = arith.index_cast %c1_i32 : i32 to index
    %c0_16 = arith.constant 0 : index
    %c0_17 = arith.constant 0 : index
    %39 = vector.load %arg1[%38, %c0_16, %c0_17] : memref<2x128x400xf32, #tpu.memory_space<vmem>>, vector<1x128x400xf32>
    %40 = vector.shape_cast %39 : vector<1x128x400xf32> to vector<128x400xf32>
    %41 = arith.truncf %40 : vector<128x400xf32> to vector<128x400xbf16>
    %cst_18 = arith.constant dense<0.000000e+00> : vector<128x400xf32>
    %42 = tpu.matmul %0, %41, %cst_18 {dimension_numbers = #tpu.dot_dimension_numbers<[1], [0], [0], [1], [0, 0, 1, 1], [], []>} : vector<128x128xbf16>, vector<128x400xbf16>, vector<128x400xf32> -> vector<128x400xf32>
    %43 = vector.broadcast %1 : vector<128x1xf32> to vector<128x400xf32>
    %44 = arith.addf %42, %43 : vector<128x400xf32>
    %cst_19 = arith.constant dense<0.000000e+00> : vector<400xf32>
    %45 = vector.multi_reduction <add>, %44, %cst_19 [0] : vector<128x400xf32> to vector<400xf32>
    %46 = vector.shape_cast %45 : vector<400xf32> to vector<1x400xf32>
    %cst_20 = arith.constant 1.280000e+02 : f32
    %47 = vector.broadcast %cst_20 : f32 to vector<1x400xf32>
    %48 = arith.divf %46, %47 : vector<1x400xf32>
    %49 = arith.mulf %44, %44 : vector<128x400xf32>
    %cst_21 = arith.constant dense<0.000000e+00> : vector<400xf32>
    %50 = vector.multi_reduction <add>, %49, %cst_21 [0] : vector<128x400xf32> to vector<400xf32>
    %51 = vector.shape_cast %50 : vector<400xf32> to vector<1x400xf32>
    %cst_22 = arith.constant 1.280000e+02 : f32
    %52 = vector.broadcast %cst_22 : f32 to vector<1x400xf32>
    %53 = arith.divf %51, %52 : vector<1x400xf32>
    %54 = arith.mulf %48, %48 : vector<1x400xf32>
    %55 = arith.subf %53, %54 : vector<1x400xf32>
    %cst_23 = arith.constant 9.99999974E-6 : f32
    %56 = vector.broadcast %cst_23 : f32 to vector<1x400xf32>
    %57 = arith.addf %55, %56 : vector<1x400xf32>
    %58 = math.rsqrt %57 : vector<1x400xf32>
    %59 = vector.broadcast %48 : vector<1x400xf32> to vector<128x400xf32>
    %60 = arith.subf %44, %59 : vector<128x400xf32>
    %61 = vector.broadcast %58 : vector<1x400xf32> to vector<128x400xf32>
    %62 = arith.mulf %60, %61 : vector<128x400xf32>
    %63 = vector.broadcast %2 : vector<128x1xf32> to vector<128x400xf32>
    %64 = arith.mulf %62, %63 : vector<128x400xf32>
    %65 = vector.broadcast %3 : vector<128x1xf32> to vector<128x400xf32>
    %66 = arith.addf %64, %65 : vector<128x400xf32>
    %67 = arith.addf %66, %40 : vector<128x400xf32>
    %68 = arith.index_cast %c1_i32 : i32 to index
    %c0_24 = arith.constant 0 : index
    %c0_25 = arith.constant 0 : index
    %69 = vector.load %arg6[%68, %c0_24, %c0_25] : memref<2x128x400xf32, #tpu.memory_space<vmem>>, vector<1x128x400xf32>
    %70 = vector.shape_cast %69 : vector<1x128x400xf32> to vector<128x400xf32>
    %71 = vector.shape_cast %67 : vector<128x400xf32> to vector<1x128x400xf32>
    tpu.vector_store %arg6[%68, %c0_24, %c0_25], %71 {strides = array<i32>} : memref<2x128x400xf32, #tpu.memory_space<vmem>>, vector<1x128x400xf32>,
    %c2_i32 = arith.constant 2 : i32
    return
  }
  func.func @transform_0(%arg0: i32) -> (i32, i32, i32) {
    %c0_i32 = arith.constant 0 : i32
    %c0_i32_0 = arith.constant 0 : i32
    %c0_i32_1 = arith.constant 0 : i32
    return %arg0, %c0_i32, %c0_i32_0 : i32, i32, i32
  }
  func.func @transform_1(%arg0: i32) -> (i32, i32) {
    %c0_i32 = arith.constant 0 : i32
    %c0_i32_0 = arith.constant 0 : i32
    %c0_i32_1 = arith.constant 0 : i32
    return %c0_i32, %c0_i32_0 : i32, i32
  }
  func.func @transform_2(%arg0: i32) -> (i32, i32) {
    %c0_i32 = arith.constant 0 : i32
    %c0_i32_0 = arith.constant 0 : i32
    %c0_i32_1 = arith.constant 0 : i32
    return %c0_i32, %c0_i32_0 : i32, i32
  }
  func.func @transform_3(%arg0: i32) -> (i32, i32) {
    %c0_i32 = arith.constant 0 : i32
    %c0_i32_0 = arith.constant 0 : i32
    %c0_i32_1 = arith.constant 0 : i32
    return %c0_i32, %c0_i32_0 : i32, i32
  }
  func.func @transform_4(%arg0: i32) -> (i32, i32) {
    %c0_i32 = arith.constant 0 : i32
    %c0_i32_0 = arith.constant 0 : i32
    %c0_i32_1 = arith.constant 0 : i32
    return %c0_i32, %c0_i32_0 : i32, i32
  }
  func.func @transform_5(%arg0: i32) -> (i32, i32, i32) {
    %c0_i32 = arith.constant 0 : i32
    %c0_i32_0 = arith.constant 0 : i32
    %c0_i32_1 = arith.constant 0 : i32
    return %arg0, %c0_i32, %c0_i32_0 : i32, i32, i32
  }
}

</mosaic_0001>

<llo_original>
// kernel: tpu_custom_call.1
$region0: #{tpu_custom_call.1}
  #allocation0 [shape = 'u32[]', space=smem, size = 0x4, offset = 0x4, fixed_abs, tag = 'smem constant byte address 0x4 - core index']
  #allocation1 [shape = 'u32[144,128]{1,0:T(1,128)}', space=vmem, size = 0x12000, scoped, tag = 'internal scratch']
  %s0 = inlined_call_operand.vmem [shape: f32[4,128,400], index: 0, kind: input, shape index: {}]
  %s1 = inlined_call_operand.vmem [shape: bf16[128,128], index: 1, kind: input, shape index: {}]
  %s2 = inlined_call_operand.vmem [shape: f32[128,1], index: 2, kind: input, shape index: {}]
  %s3 = inlined_call_operand.vmem [shape: f32[128,1], index: 3, kind: input, shape index: {}]
  %s4 = inlined_call_operand.vmem [shape: f32[128,1], index: 4, kind: input, shape index: {}]
  %s5 = inlined_call_operand.vmem [shape: f32[4,128,400], index: 5, kind: output, shape index: {}]
  %s6 = sld [smem:[#allocation0]]
  $region53: #{tpu_custom_call.1} parent=0
    _
  %s8 = ssub.s32 1, %s6
  %s9 = scalar_select 0, %s8, %s6
  loop: start=0, step=1, limit=4
  $region2: #{tpu_custom_call.1} parent=0 // loop_pre_header
    _
  $region3: #{tpu_custom_call.1} parent=0 // loop_header
    %s11 = sphi 0, %s15
    %p12 = scmp.ge.s32.totalorder %s11, 4
    %s21 = sphi 0, %s23
    %s24 = sphi 0, %s21
    %s25 = sphi 0, %s24
    %s41 = sphi 0, %s25
    %s45 = sphi 0, %s45
    %s47 = sphi 0, %s45
    %s48 = sphi 0, %s47
    %s62 = sphi 0, %s48
    %s66 = sphi 0, %s66
    %s68 = sphi 0, %s66
    %s69 = sphi 0, %s68
    %s83 = sphi 0, %s69
    %s87 = sphi 0, %s87
    %s89 = sphi 0, %s87
    %s90 = sphi 0, %s89
    %s104 = sphi 0, %s90
    %s108 = sphi 0, %s108
    %s110 = sphi 0, %s108
    %s111 = sphi 0, %s110
    %s125 = sphi 0, %s111
    %s131 = sphi 0, %s133
    %s134 = sphi 0, %s131
    %s135 = sphi 0, %s134
    %s151 = sphi 0, %s135
  $region4: #{tpu_custom_call.1} parent=0 // loop_header_branch
    %14 = sbr.rel (%p12) target = $region8
  $region5: #{tpu_custom_call.1} parent=0 // loop_body
    %s16 = ssub.s32 %s11, 1
    %s17 = ssub.s32 %s11, 2
    %s18 = sadd.s32 %s11, 1
    %s19 = ssub.s32 %s11, %s18
    %p20 = scmp.eq.s32.totalorder %s19, 0
    %s22 = sadd.s32 %s21, 1
    %s23 = scalar_select %p20, %s21, %s22
    %p26 = pneg %p20
    %p27 = scmp.eq.s32.totalorder %s11, 1
    %p28 = por %p26, %p27
    %p29 = scmp.ne.s32.totalorder %s21, %s24
    %p30 = scmp.eq.s32.totalorder %s11, 0
    %p31 = por %p29, %p30
    %p32 = scmp.ne.s32.totalorder %s21, %s24
    %p33 = scmp.eq.s32.totalorder %s16, 1
    %p34 = por %p32, %p33
    %p35 = scmp.ne.s32.totalorder %s24, %s25
    %p36 = scmp.eq.s32.totalorder %s16, 0
    %p37 = por %p35, %p36
    %p38 = scmp.ne.s32.totalorder %s24, %s25
    %p39 = scmp.eq.s32.totalorder %s17, 1
    %p40 = por %p38, %p39
    %p42 = scmp.ne.s32.totalorder %s25, %s41
    %p43 = scmp.eq.s32.totalorder %s17, 0
    %p44 = por %p42, %p43
    %s46 = sadd.s32 %s45, 1
    %p49 = scmp.eq.s32.totalorder %s11, 1
    %p50 = scmp.ne.s32.totalorder %s45, %s47
    %p51 = scmp.eq.s32.totalorder %s11, 0
    %p52 = por %p50, %p51
    %p53 = scmp.ne.s32.totalorder %s45, %s47
    %p54 = scmp.eq.s32.totalorder %s16, 1
    %p55 = por %p53, %p54
    %p56 = scmp.ne.s32.totalorder %s47, %s48
    %p57 = scmp.eq.s32.totalorder %s16, 0
    %p58 = por %p56, %p57
    %p59 = scmp.ne.s32.totalorder %s47, %s48
    %p60 = scmp.eq.s32.totalorder %s17, 1
    %p61 = por %p59, %p60
    %p63 = scmp.ne.s32.totalorder %s48, %s62
    %p64 = scmp.eq.s32.totalorder %s17, 0
    %p65 = por %p63, %p64
    %s67 = sadd.s32 %s66, 1
    %p70 = scmp.eq.s32.totalorder %s11, 1
    %p71 = scmp.ne.s32.totalorder %s66, %s68
    %p72 = scmp.eq.s32.totalorder %s11, 0
    %p73 = por %p71, %p72
    %p74 = scmp.ne.s32.totalorder %s66, %s68
    %p75 = scmp.eq.s32.totalorder %s16, 1
    %p76 = por %p74, %p75
    %p77 = scmp.ne.s32.totalorder %s68, %s69
    %p78 = scmp.eq.s32.totalorder %s16, 0
    %p79 = por %p77, %p78
    %p80 = scmp.ne.s32.totalorder %s68, %s69
    %p81 = scmp.eq.s32.totalorder %s17, 1
    %p82 = por %p80, %p81
    %p84 = scmp.ne.s32.totalorder %s69, %s83
    %p85 = scmp.eq.s32.totalorder %s17, 0
    %p86 = por %p84, %p85
    %s88 = sadd.s32 %s87, 1
    %p91 = scmp.eq.s32.totalorder %s11, 1
    %p92 = scmp.ne.s32.totalorder %s87, %s89
    %p93 = scmp.eq.s32.totalorder %s11, 0
    %p94 = por %p92, %p93
    %p95 = scmp.ne.s32.totalorder %s87, %s89
    %p96 = scmp.eq.s32.totalorder %s16, 1
    %p97 = por %p95, %p96
    %p98 = scmp.ne.s32.totalorder %s89, %s90
    %p99 = scmp.eq.s32.totalorder %s16, 0
    %p100 = por %p98, %p99
    %p101 = scmp.ne.s32.totalorder %s89, %s90
    %p102 = scmp.eq.s32.totalorder %s17, 1
    %p103 = por %p101, %p102
    %p105 = scmp.ne.s32.totalorder %s90, %s104
    %p106 = scmp.eq.s32.totalorder %s17, 0
    %p107 = por %p105, %p106
    %s109 = sadd.s32 %s108, 1
    %p112 = scmp.eq.s32.totalorder %s11, 1
    %p113 = scmp.ne.s32.totalorder %s108, %s110
    %p114 = scmp.eq.s32.totalorder %s11, 0
    %p115 = por %p113, %p114
    %p116 = scmp.ne.s32.totalorder %s108, %s110
    %p117 = scmp.eq.s32.totalorder %s16, 1
    %p118 = por %p116, %p117
    %p119 = scmp.ne.s32.totalorder %s110, %s111
    %p120 = scmp.eq.s32.totalorder %s16, 0
    %p121 = por %p119, %p120
    %p122 = scmp.ne.s32.totalorder %s110, %s111
    %p123 = scmp.eq.s32.totalorder %s17, 1
    %p124 = por %p122, %p123
    %p126 = scmp.ne.s32.totalorder %s111, %s125
    %p127 = scmp.eq.s32.totalorder %s17, 0
    %p128 = por %p126, %p127
    %s129 = ssub.s32 %s11, %s18
    %p130 = scmp.eq.s32.totalorder %s129, 0
    %s132 = sadd.s32 %s131, 1
    %s133 = scalar_select %p130, %s131, %s132
    %p136 = pneg %p130
    %p137 = scmp.eq.s32.totalorder %s11, 1
    %p138 = por %p136, %p137
    %p139 = scmp.ne.s32.totalorder %s131, %s134
    %p140 = scmp.eq.s32.totalorder %s11, 0
    %p141 = por %p139, %p140
    %p142 = scmp.ne.s32.totalorder %s131, %s134
    %p143 = scmp.eq.s32.totalorder %s16, 1
    %p144 = por %p142, %p143
    %p145 = scmp.ne.s32.totalorder %s134, %s135
    %p146 = scmp.eq.s32.totalorder %s16, 0
    %p147 = por %p145, %p146
    %p148 = scmp.ne.s32.totalorder %s134, %s135
    %p149 = scmp.eq.s32.totalorder %s17, 1
    %p150 = por %p148, %p149
    %p152 = scmp.ne.s32.totalorder %s135, %s151
    %p153 = scmp.eq.s32.totalorder %s17, 0
    %p154 = por %p152, %p153
    %p155 = scmp.le.s32.totalorder 1, %s11
    %p156 = scmp.lt.s32.totalorder %s11, 3
    %p157 = pnand %p155, %p156
    %p158 = pneg %p157
    // Predicated region
    $region9: #{tpu_custom_call.1} parent=5 // pred_check
      _
    $region10: #{tpu_custom_call.1} parent=5 // pred_check_branch
      %160 = sbr.rel (%p157) target = $region12
    $region11: #{tpu_custom_call.1} parent=5 // pred_region
      %s161 = ssub.s32 %s11, 1
      // Predicated region
      $region13: #{tpu_custom_call.1} parent=11 // pred_check
        %p162 = pneg %p58
      $region14: #{tpu_custom_call.1} parent=11 // pred_check_branch
        %164 = sbr.rel (%p162) target = $region16
      $region15: #{tpu_custom_call.1} parent=11 // pred_region
        _
      $region16: #{tpu_custom_call.1} parent=11 // pred_fallthru
        _
      // Predicated region
      $region17: #{tpu_custom_call.1} parent=11 // pred_check
        %p165 = pneg %p79
      $region18: #{tpu_custom_call.1} parent=11 // pred_check_branch
        %167 = sbr.rel (%p165) target = $region20
      $region19: #{tpu_custom_call.1} parent=11 // pred_region
        _
      $region20: #{tpu_custom_call.1} parent=11 // pred_fallthru
        _
      // Predicated region
      $region21: #{tpu_custom_call.1} parent=11 // pred_check
        %p168 = pneg %p100
      $region22: #{tpu_custom_call.1} parent=11 // pred_check_branch
        %170 = sbr.rel (%p168) target = $region24
      $region23: #{tpu_custom_call.1} parent=11 // pred_region
        _
      $region24: #{tpu_custom_call.1} parent=11 // pred_fallthru
        _
      // Predicated region
      $region25: #{tpu_custom_call.1} parent=11 // pred_check
        %p171 = pneg %p121
      $region26: #{tpu_custom_call.1} parent=11 // pred_check_branch
        %173 = sbr.rel (%p171) target = $region28
      $region27: #{tpu_custom_call.1} parent=11 // pred_region
        _
      $region28: #{tpu_custom_call.1} parent=11 // pred_fallthru
        _
    $region12: #{tpu_custom_call.1} parent=5 // pred_fallthru
      _
    %p174 = scmp.lt.s32.totalorder %s11, 2
    // Predicated region
    $region29: #{tpu_custom_call.1} parent=5 // pred_check
      %p175 = pneg %p174
    $region30: #{tpu_custom_call.1} parent=5 // pred_check_branch
      %177 = sbr.rel (%p175) target = $region32
    $region31: #{tpu_custom_call.1} parent=5 // pred_region
      // Predicated region
      $region33: #{tpu_custom_call.1} parent=31 // pred_check
        %p178 = pneg %p31
      $region34: #{tpu_custom_call.1} parent=31 // pred_check_branch
        %180 = sbr.rel (%p178) target = $region36
      $region35: #{tpu_custom_call.1} parent=31 // pred_region
        %s181 = smul.u32 2, %s11
        %p182 = scmp.lt.s32.totalorder %s181, 3
        %s183 = scalar_select %p182, %s181, 3
        %s184 = smul.addr %s183, 64
        %s185 = smul.addr %s184, 8
        %s186 = scalar_lea.vmem %s0, %s185
        %s187 = smul.u32 2, %s11
      $region36: #{tpu_custom_call.1} parent=31 // pred_fallthru
        _
    $region32: #{tpu_custom_call.1} parent=5 // pred_fallthru
      _
    %p188 = scmp.le.s32.totalorder 1, %s11
    %p189 = scmp.lt.s32.totalorder %s11, 3
    %p190 = pnand %p188, %p189
    %p191 = pneg %p190
    // Predicated region
    $region37: #{tpu_custom_call.1} parent=5 // pred_check
      _
    $region38: #{tpu_custom_call.1} parent=5 // pred_check_branch
      %193 = sbr.rel (%p190) target = $region40
    $region39: #{tpu_custom_call.1} parent=5 // pred_region
      %s194 = ssub.s32 %s11, 1
      %s195 = smul.u32 2, %s16
      %p196 = scmp.lt.s32.totalorder %s195, 3
      %s197 = scalar_select %p196, %s195, 3
      %s198 = smul.addr %s197, 64
      %s199 = smul.addr %s198, 8
      %s200 = scalar_lea.vmem %s0, %s199
      %p201 = pneg %p37
      %p202 = pneg %p34
      %p203 = pneg %p58
      %p204 = pneg %p55
      %p205 = pneg %p79
      %p206 = pneg %p76
      %p207 = pneg %p100
      %p208 = pneg %p97
      %p209 = pneg %p121
      %p210 = pneg %p118
      %p211 = pneg %p147
      %p212 = pneg %p144
      %s213 = smul.u32 2, %s16
      %p214 = scmp.lt.s32.totalorder %s213, 3
      %s215 = scalar_select %p214, %s213, 3
      %s216 = smul.addr %s215, 64
      %s217 = smul.addr %s216, 8
      %s218 = scalar_lea.vmem %s5, %s217
      %s219 = smul.u32 2, %s16
      %p220 = scmp.lt.s32.totalorder %s219, 3
      %s221 = scalar_select %p220, %s219, 3
      %s222 = smul.addr %s221, 64
      %s223 = smul.addr %s222, 8
      %s224 = scalar_lea.vmem %s0, %s223
      %s225 = smul.u32 2, %s16
      %s226 = smul.u32 2, %s16
      %p227 = scmp.lt.s32.totalorder %s226, 3
      %s228 = scalar_select %p227, %s226, 3
      %s229 = smul.addr %s228, 64
      %s230 = smul.addr %s229, 8
      %s231 = scalar_lea.vmem %s5, %s230
      %s232 = smul.u32 2, %s16
      %v234 = vld [vmem:[%s1] sm:$0xf]
      %v235 = vld [vmem:[%s1 + $0x4] sm:$0xf]
      %v236 = vld [vmem:[%s1 + $0x8] sm:$0xf]
      %v237 = vld [vmem:[%s1 + $0xc] sm:$0xf]
      %v238 = vld [vmem:[%s1 + $0x10] sm:$0xf]
      %v239 = vld [vmem:[%s1 + $0x14] sm:$0xf]
      %v240 = vld [vmem:[%s1 + $0x18] sm:$0xf]
      %v241 = vld [vmem:[%s1 + $0x1c] sm:$0xf]
      %v242 = vld [vmem:[%s1 + $0x20] sm:$0xf]
      %v243 = vld [vmem:[%s1 + $0x24] sm:$0xf]
      %v244 = vld [vmem:[%s1 + $0x28] sm:$0xf]
      %v245 = vld [vmem:[%s1 + $0x2c] sm:$0xf]
      %v246 = vld [vmem:[%s1 + $0x30] sm:$0xf]
      %v247 = vld [vmem:[%s1 + $0x34] sm:$0xf]
      %v248 = vld [vmem:[%s1 + $0x38] sm:$0xf]
      %v249 = vld [vmem:[%s1 + $0x3c] sm:$0xf]
      %v250 = vld [vmem:[%s2] sm:$0xff]
      %v251 = vld [vmem:[%s2 + $0x8] sm:$0xff]
      %v252 = vld [vmem:[%s2 + $0x10] sm:$0xff]
      %v253 = vld [vmem:[%s2 + $0x18] sm:$0xff]
      %v254 = vld [vmem:[%s2 + $0x20] sm:$0xff]
      %v255 = vld [vmem:[%s2 + $0x28] sm:$0xff]
      %v256 = vld [vmem:[%s2 + $0x30] sm:$0xff]
      %v257 = vld [vmem:[%s2 + $0x38] sm:$0xff]
      %v258 = vld [vmem:[%s2 + $0x40] sm:$0xff]
      %v259 = vld [vmem:[%s2 + $0x48] sm:$0xff]
      %v260 = vld [vmem:[%s2 + $0x50] sm:$0xff]
      %v261 = vld [vmem:[%s2 + $0x58] sm:$0xff]
      %v262 = vld [vmem:[%s2 + $0x60] sm:$0xff]
      %v263 = vld [vmem:[%s2 + $0x68] sm:$0xff]
      %v264 = vld [vmem:[%s2 + $0x70] sm:$0xff]
      %v265 = vld [vmem:[%s2 + $0x78] sm:$0xff]
      %v266 = vld [vmem:[%s3] sm:$0xff]
      %v267 = vld [vmem:[%s3 + $0x8] sm:$0xff]
      %v268 = vld [vmem:[%s3 + $0x10] sm:$0xff]
      %v269 = vld [vmem:[%s3 + $0x18] sm:$0xff]
      %v270 = vld [vmem:[%s3 + $0x20] sm:$0xff]
      %v271 = vld [vmem:[%s3 + $0x28] sm:$0xff]
      %v272 = vld [vmem:[%s3 + $0x30] sm:$0xff]
      %v273 = vld [vmem:[%s3 + $0x38] sm:$0xff]
      %v274 = vld [vmem:[%s3 + $0x40] sm:$0xff]
      %v275 = vld [vmem:[%s3 + $0x48] sm:$0xff]
      %v276 = vld [vmem:[%s3 + $0x50] sm:$0xff]
      %v277 = vld [vmem:[%s3 + $0x58] sm:$0xff]
      %v278 = vld [vmem:[%s3 + $0x60] sm:$0xff]
      %v279 = vld [vmem:[%s3 + $0x68] sm:$0xff]
      %v280 = vld [vmem:[%s3 + $0x70] sm:$0xff]
      %v281 = vld [vmem:[%s3 + $0x78] sm:$0xff]
      %v282 = vld [vmem:[%s4] sm:$0xff]
      %v283 = vld [vmem:[%s4 + $0x8] sm:$0xff]
      %v284 = vld [vmem:[%s4 + $0x10] sm:$0xff]
      %v285 = vld [vmem:[%s4 + $0x18] sm:$0xff]
      %v286 = vld [vmem:[%s4 + $0x20] sm:$0xff]
      %v287 = vld [vmem:[%s4 + $0x28] sm:$0xff]
      %v288 = vld [vmem:[%s4 + $0x30] sm:$0xff]
      %v289 = vld [vmem:[%s4 + $0x38] sm:$0xff]
      %v290 = vld [vmem:[%s4 + $0x40] sm:$0xff]
      %v291 = vld [vmem:[%s4 + $0x48] sm:$0xff]
      %v292 = vld [vmem:[%s4 + $0x50] sm:$0xff]
      %v293 = vld [vmem:[%s4 + $0x58] sm:$0xff]
      %v294 = vld [vmem:[%s4 + $0x60] sm:$0xff]
      %v295 = vld [vmem:[%s4 + $0x68] sm:$0xff]
      %v296 = vld [vmem:[%s4 + $0x70] sm:$0xff]
      %v297 = vld [vmem:[%s4 + $0x78] sm:$0xff]
      %v298 = vld [vmem:[%s224] sm:$0xff]
      %v299 = vld [vmem:[%s224 + $0x8] sm:$0xff]
      %v300 = vld [vmem:[%s224 + $0x10] sm:$0xff]
      %v301 = vld [vmem:[%s224 + $0x18] sm:$0xff]
      %v302 = vld [vmem:[%s224 + $0x20] sm:$0xff]
      %v303 = vld [vmem:[%s224 + $0x28] sm:$0xff]
      %v304 = vld [vmem:[%s224 + $0x30] sm:$0xff]
      %v305 = vld [vmem:[%s224 + $0x38] sm:$0xff]
      %v306 = vld [vmem:[%s224 + $0x40] sm:$0xff]
      %v307 = vld [vmem:[%s224 + $0x48] sm:$0xff]
      %v308 = vld [vmem:[%s224 + $0x50] sm:$0xff]
      %v309 = vld [vmem:[%s224 + $0x58] sm:$0xff]
      %v310 = vld [vmem:[%s224 + $0x60] sm:$0xff]
      %v311 = vld [vmem:[%s224 + $0x68] sm:$0xff]
      %v312 = vld [vmem:[%s224 + $0x70] sm:$0xff]
      %v313 = vld [vmem:[%s224 + $0x78] sm:$0xff]
      %v314 = vld [vmem:[%s224 + $0x80] sm:$0xff]
      %v315 = vld [vmem:[%s224 + $0x88] sm:$0xff]
      %v316 = vld [vmem:[%s224 + $0x90] sm:$0xff]
      %v317 = vld [vmem:[%s224 + $0x98] sm:$0xff]
      %v318 = vld [vmem:[%s224 + $0xa0] sm:$0xff]
      %v319 = vld [vmem:[%s224 + $0xa8] sm:$0xff]
      %v320 = vld [vmem:[%s224 + $0xb0] sm:$0xff]
      %v321 = vld [vmem:[%s224 + $0xb8] sm:$0xff]
      %v322 = vld [vmem:[%s224 + $0xc0] sm:$0xff]
      %v323 = vld [vmem:[%s224 + $0xc8] sm:$0xff]
      %v324 = vld [vmem:[%s224 + $0xd0] sm:$0xff]
      %v325 = vld [vmem:[%s224 + $0xd8] sm:$0xff]
      %v326 = vld [vmem:[%s224 + $0xe0] sm:$0xff]
      %v327 = vld [vmem:[%s224 + $0xe8] sm:$0xff]
      %v328 = vld [vmem:[%s224 + $0xf0] sm:$0xff]
      %v329 = vld [vmem:[%s224 + $0xf8] sm:$0xff]
      %v330 = vld [vmem:[%s224 + $0x100] sm:$0xff]
      %v331 = vld [vmem:[%s224 + $0x108] sm:$0xff]
      %v332 = vld [vmem:[%s224 + $0x110] sm:$0xff]
      %v333 = vld [vmem:[%s224 + $0x118] sm:$0xff]
      %v334 = vld [vmem:[%s224 + $0x120] sm:$0xff]
      %v335 = vld [vmem:[%s224 + $0x128] sm:$0xff]
      %v336 = vld [vmem:[%s224 + $0x130] sm:$0xff]
      %v337 = vld [vmem:[%s224 + $0x138] sm:$0xff]
      %v338 = vld [vmem:[%s224 + $0x140] sm:$0xff]
      %v339 = vld [vmem:[%s224 + $0x148] sm:$0xff]
      %v340 = vld [vmem:[%s224 + $0x150] sm:$0xff]
      %v341 = vld [vmem:[%s224 + $0x158] sm:$0xff]
      %v342 = vld [vmem:[%s224 + $0x160] sm:$0xff]
      %v343 = vld [vmem:[%s224 + $0x168] sm:$0xff]
      %v344 = vld [vmem:[%s224 + $0x170] sm:$0xff]
      %v345 = vld [vmem:[%s224 + $0x178] sm:$0xff]
      %v346 = vld [vmem:[%s224 + $0x180] sm:$0xff]
      %v347 = vld [vmem:[%s224 + $0x188] sm:$0xff]
      %v348 = vld [vmem:[%s224 + $0x190] sm:$0xff]
      %v349 = vld [vmem:[%s224 + $0x198] sm:$0xff]
      %v350 = vld [vmem:[%s224 + $0x1a0] sm:$0xff]
      %v351 = vld [vmem:[%s224 + $0x1a8] sm:$0xff]
      %v352 = vld [vmem:[%s224 + $0x1b0] sm:$0xff]
      %v353 = vld [vmem:[%s224 + $0x1b8] sm:$0xff]
      %v354 = vld [vmem:[%s224 + $0x1c0] sm:$0xff]
      %v355 = vld [vmem:[%s224 + $0x1c8] sm:$0xff]
      %v356 = vld [vmem:[%s224 + $0x1d0] sm:$0xff]
      %v357 = vld [vmem:[%s224 + $0x1d8] sm:$0xff]
      %v358 = vld [vmem:[%s224 + $0x1e0] sm:$0xff]
      %v359 = vld [vmem:[%s224 + $0x1e8] sm:$0xff]
      %v360 = vld [vmem:[%s224 + $0x1f0] sm:$0xff]
      %v361 = vld [vmem:[%s224 + $0x1f8] sm:$0xff]
      %v362 = vpack.c.bf16 %v302, %v298
      %v363 = vpack.c.bf16 %v303, %v299
      %v364 = vpack.c.bf16 %v304, %v300
      %v365 = vpack.c.bf16 %v305, %v301
      %v366 = vpack.c.bf16 %v310, %v306
      %v367 = vpack.c.bf16 %v311, %v307
      %v368 = vpack.c.bf16 %v312, %v308
      %v369 = vpack.c.bf16 %v313, %v309
      %v370 = vpack.c.bf16 %v318, %v314
      %v371 = vpack.c.bf16 %v319, %v315
      %v372 = vpack.c.bf16 %v320, %v316
      %v373 = vpack.c.bf16 %v321, %v317
      %v374 = vpack.c.bf16 %v326, %v322
      %v375 = vpack.c.bf16 %v327, %v323
      %v376 = vpack.c.bf16 %v328, %v324
      %v377 = vpack.c.bf16 %v329, %v325
      %v378 = vpack.c.bf16 %v334, %v330
      %v379 = vpack.c.bf16 %v335, %v331
      %v380 = vpack.c.bf16 %v336, %v332
      %v381 = vpack.c.bf16 %v337, %v333
      %v382 = vpack.c.bf16 %v342, %v338
      %v383 = vpack.c.bf16 %v343, %v339
      %v384 = vpack.c.bf16 %v344, %v340
      %v385 = vpack.c.bf16 %v345, %v341
      %v386 = vpack.c.bf16 %v350, %v346
      %v387 = vpack.c.bf16 %v351, %v347
      %v388 = vpack.c.bf16 %v352, %v348
      %v389 = vpack.c.bf16 %v353, %v349
      %v390 = vpack.c.bf16 %v358, %v354
      %v391 = vpack.c.bf16 %v359, %v355
      %v392 = vpack.c.bf16 %v360, %v356
      %v393 = vpack.c.bf16 %v361, %v357
      %395 = vset.pattern.permute.xlu0 0
      %396 = vperm.xlu0 %395, %v250
      %v397 = vpop.permute.xlu0 %396
      %400 = vset.pattern.permute.xlu0 0
      %401 = vperm.xlu0 %400, %v251
      %v402 = vpop.permute.xlu0 %401
      %405 = vset.pattern.permute.xlu0 0
      %406 = vperm.xlu0 %405, %v252
      %v407 = vpop.permute.xlu0 %406
      %410 = vset.pattern.permute.xlu0 0
      %411 = vperm.xlu0 %410, %v253
      %v412 = vpop.permute.xlu0 %411
      %415 = vset.pattern.permute.xlu0 0
      %416 = vperm.xlu0 %415, %v254
      %v417 = vpop.permute.xlu0 %416
      %420 = vset.pattern.permute.xlu0 0
      %421 = vperm.xlu0 %420, %v255
      %v422 = vpop.permute.xlu0 %421
      %425 = vset.pattern.permute.xlu0 0
      %426 = vperm.xlu0 %425, %v256
      %v427 = vpop.permute.xlu0 %426
      %430 = vset.pattern.permute.xlu0 0
      %431 = vperm.xlu0 %430, %v257
      %v432 = vpop.permute.xlu0 %431
      %435 = vset.pattern.permute.xlu0 0
      %436 = vperm.xlu0 %435, %v258
      %v437 = vpop.permute.xlu0 %436
      %440 = vset.pattern.permute.xlu0 0
      %441 = vperm.xlu0 %440, %v259
      %v442 = vpop.permute.xlu0 %441
      %445 = vset.pattern.permute.xlu0 0
      %446 = vperm.xlu0 %445, %v260
      %v447 = vpop.permute.xlu0 %446
      %450 = vset.pattern.permute.xlu0 0
      %451 = vperm.xlu0 %450, %v261
      %v452 = vpop.permute.xlu0 %451
      %455 = vset.pattern.permute.xlu0 0
      %456 = vperm.xlu0 %455, %v262
      %v457 = vpop.permute.xlu0 %456
      %460 = vset.pattern.permute.xlu0 0
      %461 = vperm.xlu0 %460, %v263
      %v462 = vpop.permute.xlu0 %461
      %465 = vset.pattern.permute.xlu0 0
      %466 = vperm.xlu0 %465, %v264
      %v467 = vpop.permute.xlu0 %466
      %470 = vset.pattern.permute.xlu0 0
      %471 = vperm.xlu0 %470, %v265
      %v472 = vpop.permute.xlu0 %471
      %v490 = vunpack.c.l.b16 %v234
      %v491 = vunpack.c.l.b16 %v235
      %v492 = vunpack.c.l.b16 %v236
      %v493 = vunpack.c.l.b16 %v237
      %v494 = vunpack.c.l.b16 %v238
      %v495 = vunpack.c.l.b16 %v239
      %v496 = vunpack.c.l.b16 %v240
      %v497 = vunpack.c.l.b16 %v241
      %v498 = vunpack.c.l.b16 %v242
      %v499 = vunpack.c.l.b16 %v243
      %v500 = vunpack.c.l.b16 %v244
      %v501 = vunpack.c.l.b16 %v245
      %v502 = vunpack.c.l.b16 %v246
      %v503 = vunpack.c.l.b16 %v247
      %v504 = vunpack.c.l.b16 %v248
      %v505 = vunpack.c.l.b16 %v249
      %v506 = vpack.c.b16 %v491, %v490
      %v507 = vpack.c.b16 %v493, %v492
      %v508 = vpack.c.b16 %v495, %v494
      %v509 = vpack.c.b16 %v497, %v496
      %v510 = vpack.c.b16 %v499, %v498
      %v511 = vpack.c.b16 %v501, %v500
      %v512 = vpack.c.b16 %v503, %v502
      %v513 = vpack.c.b16 %v505, %v504
      %522 = vmatprep.subr.bf16.mxu0 %v391
      %523 = vmatpush1.bf16.msra.mxu0 %v390
      %524 = vmatprep.subr.bf16.mxu0 %v387
      %525 = vmatpush1.bf16.msra.mxu0 %v386
      %526 = vmatprep.subr.bf16.mxu0 %v383
      %527 = vmatpush1.bf16.msra.mxu0 %v382
      %528 = vmatprep.subr.bf16.mxu0 %v379
      %529 = vmatpush1.bf16.msra.mxu0 %v378
      %530 = vmatprep.subr.bf16.mxu0 %v375
      %531 = vmatpush1.bf16.msra.mxu0 %v374
      %532 = vmatprep.subr.bf16.mxu0 %v371
      %533 = vmatpush1.bf16.msra.mxu0 %v370
      %534 = vmatprep.subr.bf16.mxu0 %v367
      %535 = vmatpush1.bf16.msra.mxu0 %v366
      %536 = vmatprep.subr.bf16.mxu0 %v363
      %537 = vmatpush1.bf16.msra.mxu0 %v362
      %538 = vmatprep.subr.bf16.mxu0 0
      %539 = vmatpush2.bf16.msra.mxu0 0
      %540 = vmatprep.subr.bf16.mxu0 0
      %541 = vmatpush2.bf16.msra.mxu0 0
      %542 = vmatprep.subr.bf16.mxu0 0
      %543 = vmatpush2.bf16.msra.mxu0 0
      %544 = vmatprep.subr.bf16.mxu0 0
      %545 = vmatpush2.bf16.msra.mxu0 0
      %546 = vmatprep.subr.bf16.mxu0 0
      %547 = vmatpush2.bf16.msra.mxu0 0
      %548 = vmatprep.subr.bf16.mxu0 0
      %549 = vmatpush2.bf16.msra.mxu0 0
      %550 = vmatprep.subr.bf16.mxu0 0
      %551 = vmatpush2.bf16.msra.mxu0 0
      %552 = vmatprep.subr.bf16.mxu0 0
      %553 = vmatpush2.bf16.msra.mxu0 0
      %554 = vmatprep.mubr.bf16.mxu0 0
      %555 = vmatmul.mubr.bf16.gmra.mxu0 %v506
      %v556 = vpop.f32.mrf.mxu0
      %v557 = vadd.f32 %v397, %v556
      %v558 = vpop.f32.mrf.mxu0
      %v559 = vadd.f32 %v397, %v558
      %v560 = vpop.f32.mrf.mxu0
      %v561 = vadd.f32 %v402, %v560
      %v562 = vpop.f32.mrf.mxu0
      %v563 = vadd.f32 %v402, %v562
      %564 = vmatprep.mubr.bf16.mxu0 0
      %565 = vmatmul.mubr.bf16.gmra.mxu0 %v507
      %v566 = vpop.f32.mrf.mxu0
      %v567 = vadd.f32 %v407, %v566
      %v568 = vpop.f32.mrf.mxu0
      %v569 = vadd.f32 %v407, %v568
      %v570 = vpop.f32.mrf.mxu0
      %v571 = vadd.f32 %v412, %v570
      %v572 = vpop.f32.mrf.mxu0
      %v573 = vadd.f32 %v412, %v572
      %574 = vmatprep.mubr.bf16.mxu0 0
      %575 = vmatmul.mubr.bf16.gmra.mxu0 %v508
      %v576 = vpop.f32.mrf.mxu0
      %v577 = vadd.f32 %v417, %v576
      %v578 = vpop.f32.mrf.mxu0
      %v579 = vadd.f32 %v417, %v578
      %v580 = vpop.f32.mrf.mxu0
      %v581 = vadd.f32 %v422, %v580
      %v582 = vpop.f32.mrf.mxu0
      %v583 = vadd.f32 %v422, %v582
      %584 = vmatprep.mubr.bf16.mxu0 0
      %585 = vmatmul.mubr.bf16.gmra.mxu0 %v509
      %v586 = vpop.f32.mrf.mxu0
      %v587 = vadd.f32 %v427, %v586
      %v588 = vpop.f32.mrf.mxu0
      %v589 = vadd.f32 %v427, %v588
      %v590 = vpop.f32.mrf.mxu0
      %v591 = vadd.f32 %v432, %v590
      %v592 = vpop.f32.mrf.mxu0
      %v593 = vadd.f32 %v432, %v592
      %594 = vmatprep.mubr.bf16.mxu0 0
      %595 = vmatmul.mubr.bf16.gmra.mxu0 %v510
      %v596 = vpop.f32.mrf.mxu0
      %v597 = vadd.f32 %v437, %v596
      %v598 = vpop.f32.mrf.mxu0
      %v599 = vadd.f32 %v437, %v598
      %v600 = vpop.f32.mrf.mxu0
      %v601 = vadd.f32 %v442, %v600
      %v602 = vpop.f32.mrf.mxu0
      %v603 = vadd.f32 %v442, %v602
      %604 = vmatprep.mubr.bf16.mxu0 0
      %605 = vmatmul.mubr.bf16.gmra.mxu0 %v511
      %v606 = vpop.f32.mrf.mxu0
      %v607 = vadd.f32 %v447, %v606
      %v608 = vpop.f32.mrf.mxu0
      %v609 = vadd.f32 %v447, %v608
      %v610 = vpop.f32.mrf.mxu0
      %v611 = vadd.f32 %v452, %v610
      %v612 = vpop.f32.mrf.mxu0
      %v613 = vadd.f32 %v452, %v612
      %614 = vmatprep.mubr.bf16.mxu0 0
      %615 = vmatmul.mubr.bf16.gmra.mxu0 %v512
      %v616 = vpop.f32.mrf.mxu0
      %v617 = vadd.f32 %v457, %v616
      %v618 = vpop.f32.mrf.mxu0
      %v619 = vadd.f32 %v457, %v618
      %v620 = vpop.f32.mrf.mxu0
      %v621 = vadd.f32 %v462, %v620
      %v622 = vpop.f32.mrf.mxu0
      %v623 = vadd.f32 %v462, %v622
      %624 = vmatprep.mubr.bf16.mxu0 0
      %625 = vmatmul.mubr.bf16.gmra.mxu0 %v513
      %v626 = vpop.f32.mrf.mxu0
      %v627 = vadd.f32 %v467, %v626
      %v628 = vpop.f32.mrf.mxu0
      %v629 = vadd.f32 %v467, %v628
      %v630 = vpop.f32.mrf.mxu0
      %v631 = vadd.f32 %v472, %v630
      %v632 = vpop.f32.mrf.mxu0
      %v633 = vadd.f32 %v472, %v632
      %634 = vdwg.mxu0
      %635 = vmatprep.subr.bf16.mxu0 %v393
      %636 = vmatpush1.bf16.msra.mxu0 %v392
      %637 = vmatprep.subr.bf16.mxu0 %v389
      %638 = vmatpush1.bf16.msra.mxu0 %v388
      %639 = vmatprep.subr.bf16.mxu0 %v385
      %640 = vmatpush1.bf16.msra.mxu0 %v384
      %641 = vmatprep.subr.bf16.mxu0 %v381
      %642 = vmatpush1.bf16.msra.mxu0 %v380
      %643 = vmatprep.subr.bf16.mxu0 %v377
      %644 = vmatpush1.bf16.msra.mxu0 %v376
      %645 = vmatprep.subr.bf16.mxu0 %v373
      %646 = vmatpush1.bf16.msra.mxu0 %v372
      %647 = vmatprep.subr.bf16.mxu0 %v369
      %648 = vmatpush1.bf16.msra.mxu0 %v368
      %649 = vmatprep.subr.bf16.mxu0 %v365
      %650 = vmatpush1.bf16.msra.mxu0 %v364
      %651 = vmatprep.subr.bf16.mxu0 0
      %652 = vmatpush2.bf16.msra.mxu0 0
      %653 = vmatprep.subr.bf16.mxu0 0
      %654 = vmatpush2.bf16.msra.mxu0 0
      %655 = vmatprep.subr.bf16.mxu0 0
      %656 = vmatpush2.bf16.msra.mxu0 0
      %657 = vmatprep.subr.bf16.mxu0 0
      %658 = vmatpush2.bf16.msra.mxu0 0
      %659 = vmatprep.subr.bf16.mxu0 0
      %660 = vmatpush2.bf16.msra.mxu0 0
      %661 = vmatprep.subr.bf16.mxu0 0
      %662 = vmatpush2.bf16.msra.mxu0 0
      %663 = vmatprep.subr.bf16.mxu0 0
      %664 = vmatpush2.bf16.msra.mxu0 0
      %665 = vmatprep.subr.bf16.mxu0 0
      %666 = vmatpush2.bf16.msra.mxu0 0
      %667 = vmatprep.mubr.bf16.mxu0 0
      %668 = vmatmul.mubr.bf16.gmra.mxu0 %v506
      %v669 = vpop.f32.mrf.mxu0
      %v670 = vadd.f32 %v397, %v669
      %v671 = vpop.f32.mrf.mxu0
      %v672 = vadd.f32 %v397, %v671
      %v673 = vpop.f32.mrf.mxu0
      %v674 = vadd.f32 %v402, %v673
      %v675 = vpop.f32.mrf.mxu0
      %v676 = vadd.f32 %v402, %v675
      %677 = vmatprep.mubr.bf16.mxu0 0
      %678 = vmatmul.mubr.bf16.gmra.mxu0 %v507
      %v679 = vpop.f32.mrf.mxu0
      %v680 = vadd.f32 %v407, %v679
      %v681 = vpop.f32.mrf.mxu0
      %v682 = vadd.f32 %v407, %v681
      %v683 = vpop.f32.mrf.mxu0
      %v684 = vadd.f32 %v412, %v683
      %v685 = vpop.f32.mrf.mxu0
      %v686 = vadd.f32 %v412, %v685
      %687 = vmatprep.mubr.bf16.mxu0 0
      %688 = vmatmul.mubr.bf16.gmra.mxu0 %v508
      %v689 = vpop.f32.mrf.mxu0
      %v690 = vadd.f32 %v417, %v689
      %v691 = vpop.f32.mrf.mxu0
      %v692 = vadd.f32 %v417, %v691
      %v693 = vpop.f32.mrf.mxu0
      %v694 = vadd.f32 %v422, %v693
      %v695 = vpop.f32.mrf.mxu0
      %v696 = vadd.f32 %v422, %v695
      %697 = vmatprep.mubr.bf16.mxu0 0
      %698 = vmatmul.mubr.bf16.gmra.mxu0 %v509
      %v699 = vpop.f32.mrf.mxu0
      %v700 = vadd.f32 %v427, %v699
      %v701 = vpop.f32.mrf.mxu0
      %v702 = vadd.f32 %v427, %v701
      %v703 = vpop.f32.mrf.mxu0
      %v704 = vadd.f32 %v432, %v703
      %v705 = vpop.f32.mrf.mxu0
      %v706 = vadd.f32 %v432, %v705
      %707 = vmatprep.mubr.bf16.mxu0 0
      %708 = vmatmul.mubr.bf16.gmra.mxu0 %v510
      %v709 = vpop.f32.mrf.mxu0
      %v710 = vadd.f32 %v437, %v709
      %v711 = vpop.f32.mrf.mxu0
      %v712 = vadd.f32 %v437, %v711
      %v713 = vpop.f32.mrf.mxu0
      %v714 = vadd.f32 %v442, %v713
      %v715 = vpop.f32.mrf.mxu0
      %v716 = vadd.f32 %v442, %v715
      %717 = vmatprep.mubr.bf16.mxu0 0
      %718 = vmatmul.mubr.bf16.gmra.mxu0 %v511
      %v719 = vpop.f32.mrf.mxu0
      %v720 = vadd.f32 %v447, %v719
      %v721 = vpop.f32.mrf.mxu0
      %v722 = vadd.f32 %v447, %v721
      %v723 = vpop.f32.mrf.mxu0
      %v724 = vadd.f32 %v452, %v723
      %v725 = vpop.f32.mrf.mxu0
      %v726 = vadd.f32 %v452, %v725
      %727 = vmatprep.mubr.bf16.mxu0 0
      %728 = vmatmul.mubr.bf16.gmra.mxu0 %v512
      %v729 = vpop.f32.mrf.mxu0
      %v730 = vadd.f32 %v457, %v729
      %v731 = vpop.f32.mrf.mxu0
      %v732 = vadd.f32 %v457, %v731
      %v733 = vpop.f32.mrf.mxu0
      %v734 = vadd.f32 %v462, %v733
      %v735 = vpop.f32.mrf.mxu0
      %v736 = vadd.f32 %v462, %v735
      %737 = vmatprep.mubr.bf16.mxu0 0
      %738 = vmatmul.mubr.bf16.gmra.mxu0 %v513
      %v739 = vpop.f32.mrf.mxu0
      %v740 = vadd.f32 %v467, %v739
      %v741 = vpop.f32.mrf.mxu0
      %v742 = vadd.f32 %v467, %v741
      %v743 = vpop.f32.mrf.mxu0
      %v744 = vadd.f32 %v472, %v743
      %v745 = vpop.f32.mrf.mxu0
      %v746 = vadd.f32 %v472, %v745
      %747 = vdwg.mxu0
      %v748 = vadd.f32 %v557, %v561
      %v749 = vadd.f32 %v748, %v567
      %v750 = vadd.f32 %v749, %v571
      %v751 = vadd.f32 %v750, %v577
      %v752 = vadd.f32 %v751, %v581
      %v753 = vadd.f32 %v752, %v587
      %v754 = vadd.f32 %v753, %v591
      %v755 = vadd.f32 %v754, %v597
      %v756 = vadd.f32 %v755, %v601
      %v757 = vadd.f32 %v756, %v607
      %v758 = vadd.f32 %v757, %v611
      %v759 = vadd.f32 %v758, %v617
      %v760 = vadd.f32 %v759, %v621
      %v761 = vadd.f32 %v760, %v627
      %v762 = vadd.f32 %v761, %v631
      %v763 = vrot.slane %v762, 4
      %v764 = vadd.f32 %v762, %v763
      %v765 = vrot.slane %v764, 2
      %v766 = vadd.f32 %v764, %v765
      %v767 = vrot.slane %v766, 1
      %v768 = vadd.f32 %v766, %v767
      %v769 = vadd.f32 %v559, %v563
      %v770 = vadd.f32 %v769, %v569
      %v771 = vadd.f32 %v770, %v573
      %v772 = vadd.f32 %v771, %v579
      %v773 = vadd.f32 %v772, %v583
      %v774 = vadd.f32 %v773, %v589
      %v775 = vadd.f32 %v774, %v593
      %v776 = vadd.f32 %v775, %v599
      %v777 = vadd.f32 %v776, %v603
      %v778 = vadd.f32 %v777, %v609
      %v779 = vadd.f32 %v778, %v613
      %v780 = vadd.f32 %v779, %v619
      %v781 = vadd.f32 %v780, %v623
      %v782 = vadd.f32 %v781, %v629
      %v783 = vadd.f32 %v782, %v633
      %v784 = vrot.slane %v783, 4
      %v785 = vadd.f32 %v783, %v784
      %v786 = vrot.slane %v785, 2
      %v787 = vadd.f32 %v785, %v786
      %v788 = vrot.slane %v787, 1
      %v789 = vadd.f32 %v787, %v788
      %v790 = vadd.f32 %v670, %v674
      %v791 = vadd.f32 %v790, %v680
      %v792 = vadd.f32 %v791, %v684
      %v793 = vadd.f32 %v792, %v690
      %v794 = vadd.f32 %v793, %v694
      %v795 = vadd.f32 %v794, %v700
      %v796 = vadd.f32 %v795, %v704
      %v797 = vadd.f32 %v796, %v710
      %v798 = vadd.f32 %v797, %v714
      %v799 = vadd.f32 %v798, %v720
      %v800 = vadd.f32 %v799, %v724
      %v801 = vadd.f32 %v800, %v730
      %v802 = vadd.f32 %v801, %v734
      %v803 = vadd.f32 %v802, %v740
      %v804 = vadd.f32 %v803, %v744
      %v805 = vrot.slane %v804, 4
      %v806 = vadd.f32 %v804, %v805
      %v807 = vrot.slane %v806, 2
      %v808 = vadd.f32 %v806, %v807
      %v809 = vrot.slane %v808, 1
      %v810 = vadd.f32 %v808, %v809
      %vm811 = vcmask 130048
      %v812 = vsel %vm811, %v672, 0.0
      %v813 = vsel %vm811, %v676, 0.0
      %v814 = vadd.f32 %v812, %v813
      %v815 = vsel %vm811, %v682, 0.0
      %v816 = vadd.f32 %v814, %v815
      %v817 = vsel %vm811, %v686, 0.0
      %v818 = vadd.f32 %v816, %v817
      %v819 = vsel %vm811, %v692, 0.0
      %v820 = vadd.f32 %v818, %v819
      %v821 = vsel %vm811, %v696, 0.0
      %v822 = vadd.f32 %v820, %v821
      %v823 = vsel %vm811, %v702, 0.0
      %v824 = vadd.f32 %v822, %v823
      %v825 = vsel %vm811, %v706, 0.0
      %v826 = vadd.f32 %v824, %v825
      %v827 = vsel %vm811, %v712, 0.0
      %v828 = vadd.f32 %v826, %v827
      %v829 = vsel %vm811, %v716, 0.0
      %v830 = vadd.f32 %v828, %v829
      %v831 = vsel %vm811, %v722, 0.0
      %v832 = vadd.f32 %v830, %v831
      %v833 = vsel %vm811, %v726, 0.0
      %v834 = vadd.f32 %v832, %v833
      %v835 = vsel %vm811, %v732, 0.0
      %v836 = vadd.f32 %v834, %v835
      %v837 = vsel %vm811, %v736, 0.0
      %v838 = vadd.f32 %v836, %v837
      %v839 = vsel %vm811, %v742, 0.0
      %v840 = vadd.f32 %v838, %v839
      %v841 = vsel %vm811, %v746, 0.0
      %v842 = vadd.f32 %v840, %v841
      %v843 = vrot.slane %v842, 4
      %v844 = vadd.f32 %v842, %v843
      %v845 = vrot.slane %v844, 2
      %v846 = vadd.f32 %v844, %v845
      %v847 = vrot.slane %v846, 1
      %v848 = vadd.f32 %v846, %v847
      %v849 = vrcp.pop 128.0
      %v850 = vmul.f32 %v768, %v849
      %v851 = vmul.f32 %v789, %v849
      %v852 = vmul.f32 %v810, %v849
      %v853 = vmul.f32 %v848, %v849
      %v854 = vmul.f32 %v557, %v557
      %v855 = vmul.f32 %v559, %v559
      %v856 = vmul.f32 %v670, %v670
      %v857 = vmul.f32 %v672, %v672
      %v858 = vmul.f32 %v561, %v561
      %v859 = vmul.f32 %v563, %v563
      %v860 = vmul.f32 %v674, %v674
      %v861 = vmul.f32 %v676, %v676
      %v862 = vmul.f32 %v567, %v567
      %v863 = vmul.f32 %v569, %v569
      %v864 = vmul.f32 %v680, %v680
      %v865 = vmul.f32 %v682, %v682
      %v866 = vmul.f32 %v571, %v571
      %v867 = vmul.f32 %v573, %v573
      %v868 = vmul.f32 %v684, %v684
      %v869 = vmul.f32 %v686, %v686
      %v870 = vmul.f32 %v577, %v577
      %v871 = vmul.f32 %v579, %v579
      %v872 = vmul.f32 %v690, %v690
      %v873 = vmul.f32 %v692, %v692
      %v874 = vmul.f32 %v581, %v581
      %v875 = vmul.f32 %v583, %v583
      %v876 = vmul.f32 %v694, %v694
      %v877 = vmul.f32 %v696, %v696
      %v878 = vmul.f32 %v587, %v587
      %v879 = vmul.f32 %v589, %v589
      %v880 = vmul.f32 %v700, %v700
      %v881 = vmul.f32 %v702, %v702
      %v882 = vmul.f32 %v591, %v591
      %v883 = vmul.f32 %v593, %v593
      %v884 = vmul.f32 %v704, %v704
      %v885 = vmul.f32 %v706, %v706
      %v886 = vmul.f32 %v597, %v597
      %v887 = vmul.f32 %v599, %v599
      %v888 = vmul.f32 %v710, %v710
      %v889 = vmul.f32 %v712, %v712
      %v890 = vmul.f32 %v601, %v601
      %v891 = vmul.f32 %v603, %v603
      %v892 = vmul.f32 %v714, %v714
      %v893 = vmul.f32 %v716, %v716
      %v894 = vmul.f32 %v607, %v607
      %v895 = vmul.f32 %v609, %v609
      %v896 = vmul.f32 %v720, %v720
      %v897 = vmul.f32 %v722, %v722
      %v898 = vmul.f32 %v611, %v611
      %v899 = vmul.f32 %v613, %v613
      %v900 = vmul.f32 %v724, %v724
      %v901 = vmul.f32 %v726, %v726
      %v902 = vmul.f32 %v617, %v617
      %v903 = vmul.f32 %v619, %v619
      %v904 = vmul.f32 %v730, %v730
      %v905 = vmul.f32 %v732, %v732
      %v906 = vmul.f32 %v621, %v621
      %v907 = vmul.f32 %v623, %v623
      %v908 = vmul.f32 %v734, %v734
      %v909 = vmul.f32 %v736, %v736
      %v910 = vmul.f32 %v627, %v627
      %v911 = vmul.f32 %v629, %v629
      %v912 = vmul.f32 %v740, %v740
      %v913 = vmul.f32 %v742, %v742
      %v914 = vmul.f32 %v631, %v631
      %v915 = vmul.f32 %v633, %v633
      %v916 = vmul.f32 %v744, %v744
      %v917 = vmul.f32 %v746, %v746
      %v918 = vadd.f32 %v854, %v858
      %v919 = vadd.f32 %v918, %v862
      %v920 = vadd.f32 %v919, %v866
      %v921 = vadd.f32 %v920, %v870
      %v922 = vadd.f32 %v921, %v874
      %v923 = vadd.f32 %v922, %v878
      %v924 = vadd.f32 %v923, %v882
      %v925 = vadd.f32 %v924, %v886
      %v926 = vadd.f32 %v925, %v890
      %v927 = vadd.f32 %v926, %v894
      %v928 = vadd.f32 %v927, %v898
      %v929 = vadd.f32 %v928, %v902
      %v930 = vadd.f32 %v929, %v906
      %v931 = vadd.f32 %v930, %v910
      %v932 = vadd.f32 %v931, %v914
      %v933 = vrot.slane %v932, 4
      %v934 = vadd.f32 %v932, %v933
      %v935 = vrot.slane %v934, 2
      %v936 = vadd.f32 %v934, %v935
      %v937 = vrot.slane %v936, 1
      %v938 = vadd.f32 %v936, %v937
      %v939 = vadd.f32 %v855, %v859
      %v940 = vadd.f32 %v939, %v863
      %v941 = vadd.f32 %v940, %v867
      %v942 = vadd.f32 %v941, %v871
      %v943 = vadd.f32 %v942, %v875
      %v944 = vadd.f32 %v943, %v879
      %v945 = vadd.f32 %v944, %v883
      %v946 = vadd.f32 %v945, %v887
      %v947 = vadd.f32 %v946, %v891
      %v948 = vadd.f32 %v947, %v895
      %v949 = vadd.f32 %v948, %v899
      %v950 = vadd.f32 %v949, %v903
      %v951 = vadd.f32 %v950, %v907
      %v952 = vadd.f32 %v951, %v911
      %v953 = vadd.f32 %v952, %v915
      %v954 = vrot.slane %v953, 4
      %v955 = vadd.f32 %v953, %v954
      %v956 = vrot.slane %v955, 2
      %v957 = vadd.f32 %v955, %v956
      %v958 = vrot.slane %v957, 1
      %v959 = vadd.f32 %v957, %v958
      %v960 = vadd.f32 %v856, %v860
      %v961 = vadd.f32 %v960, %v864
      %v962 = vadd.f32 %v961, %v868
      %v963 = vadd.f32 %v962, %v872
      %v964 = vadd.f32 %v963, %v876
      %v965 = vadd.f32 %v964, %v880
      %v966 = vadd.f32 %v965, %v884
      %v967 = vadd.f32 %v966, %v888
      %v968 = vadd.f32 %v967, %v892
      %v969 = vadd.f32 %v968, %v896
      %v970 = vadd.f32 %v969, %v900
      %v971 = vadd.f32 %v970, %v904
      %v972 = vadd.f32 %v971, %v908
      %v973 = vadd.f32 %v972, %v912
      %v974 = vadd.f32 %v973, %v916
      %v975 = vrot.slane %v974, 4
      %v976 = vadd.f32 %v974, %v975
      %v977 = vrot.slane %v976, 2
      %v978 = vadd.f32 %v976, %v977
      %v979 = vrot.slane %v978, 1
      %v980 = vadd.f32 %v978, %v979
      %v981 = vsel %vm811, %v857, 0.0
      %v982 = vsel %vm811, %v861, 0.0
      %v983 = vadd.f32 %v981, %v982
      %v984 = vsel %vm811, %v865, 0.0
      %v985 = vadd.f32 %v983, %v984
      %v986 = vsel %vm811, %v869, 0.0
      %v987 = vadd.f32 %v985, %v986
      %v988 = vsel %vm811, %v873, 0.0
      %v989 = vadd.f32 %v987, %v988
      %v990 = vsel %vm811, %v877, 0.0
      %v991 = vadd.f32 %v989, %v990
      %v992 = vsel %vm811, %v881, 0.0
      %v993 = vadd.f32 %v991, %v992
      %v994 = vsel %vm811, %v885, 0.0
      %v995 = vadd.f32 %v993, %v994
      %v996 = vsel %vm811, %v889, 0.0
      %v997 = vadd.f32 %v995, %v996
      %v998 = vsel %vm811, %v893, 0.0
      %v999 = vadd.f32 %v997, %v998
      %v1000 = vsel %vm811, %v897, 0.0
      %v1001 = vadd.f32 %v999, %v1000
      %v1002 = vsel %vm811, %v901, 0.0
      %v1003 = vadd.f32 %v1001, %v1002
      %v1004 = vsel %vm811, %v905, 0.0
      %v1005 = vadd.f32 %v1003, %v1004
      %v1006 = vsel %vm811, %v909, 0.0
      %v1007 = vadd.f32 %v1005, %v1006
      %v1008 = vsel %vm811, %v913, 0.0
      %v1009 = vadd.f32 %v1007, %v1008
      %v1010 = vsel %vm811, %v917, 0.0
      %v1011 = vadd.f32 %v1009, %v1010
      %v1012 = vrot.slane %v1011, 4
      %v1013 = vadd.f32 %v1011, %v1012
      %v1014 = vrot.slane %v1013, 2
      %v1015 = vadd.f32 %v1013, %v1014
      %v1016 = vrot.slane %v1015, 1
      %v1017 = vadd.f32 %v1015, %v1016
      %v1018 = vmul.f32 %v938, %v849
      %v1019 = vmul.f32 %v959, %v849
      %v1020 = vmul.f32 %v980, %v849
      %v1021 = vmul.f32 %v1017, %v849
      %v1022 = vmul.f32 %v850, %v850
      %v1023 = vmul.f32 %v851, %v851
      %v1024 = vmul.f32 %v852, %v852
      %v1025 = vmul.f32 %v853, %v853
      %v1026 = vsub.f32 %v1018, %v1022
      %v1027 = vsub.f32 %v1019, %v1023
      %v1028 = vsub.f32 %v1020, %v1024
      %v1029 = vsub.f32 %v1021, %v1025
      %v1030 = vadd.f32 %v1026, 1e-05
      %v1031 = vadd.f32 %v1027, 1e-05
      %v1032 = vadd.f32 %v1028, 1e-05
      %v1033 = vadd.f32 %v1029, 1e-05
      %v1034 = vrsqrt.pop %v1030
      %v1035 = vrsqrt.pop %v1031
      %v1036 = vrsqrt.pop %v1032
      %v1037 = vrsqrt.pop %v1033
      %v1038 = vsub.f32 %v557, %v850
      %v1039 = vsub.f32 %v559, %v851
      %v1040 = vsub.f32 %v670, %v852
      %v1041 = vsub.f32 %v672, %v853
      %v1042 = vsub.f32 %v561, %v850
      %v1043 = vsub.f32 %v563, %v851
      %v1044 = vsub.f32 %v674, %v852
      %v1045 = vsub.f32 %v676, %v853
      %v1046 = vsub.f32 %v567, %v850
      %v1047 = vsub.f32 %v569, %v851
      %v1048 = vsub.f32 %v680, %v852
      %v1049 = vsub.f32 %v682, %v853
      %v1050 = vsub.f32 %v571, %v850
      %v1051 = vsub.f32 %v573, %v851
      %v1052 = vsub.f32 %v684, %v852
      %v1053 = vsub.f32 %v686, %v853
      %v1054 = vsub.f32 %v577, %v850
      %v1055 = vsub.f32 %v579, %v851
      %v1056 = vsub.f32 %v690, %v852
      %v1057 = vsub.f32 %v692, %v853
      %v1058 = vsub.f32 %v581, %v850
      %v1059 = vsub.f32 %v583, %v851
      %v1060 = vsub.f32 %v694, %v852
      %v1061 = vsub.f32 %v696, %v853
      %v1062 = vsub.f32 %v587, %v850
      %v1063 = vsub.f32 %v589, %v851
      %v1064 = vsub.f32 %v700, %v852
      %v1065 = vsub.f32 %v702, %v853
      %v1066 = vsub.f32 %v591, %v850
      %v1067 = vsub.f32 %v593, %v851
      %v1068 = vsub.f32 %v704, %v852
      %v1069 = vsub.f32 %v706, %v853
      %v1070 = vsub.f32 %v597, %v850
      %v1071 = vsub.f32 %v599, %v851
      %v1072 = vsub.f32 %v710, %v852
      %v1073 = vsub.f32 %v712, %v853
      %v1074 = vsub.f32 %v601, %v850
      %v1075 = vsub.f32 %v603, %v851
      %v1076 = vsub.f32 %v714, %v852
      %v1077 = vsub.f32 %v716, %v853
      %v1078 = vsub.f32 %v607, %v850
      %v1079 = vsub.f32 %v609, %v851
      %v1080 = vsub.f32 %v720, %v852
      %v1081 = vsub.f32 %v722, %v853
      %v1082 = vsub.f32 %v611, %v850
      %v1083 = vsub.f32 %v613, %v851
      %v1084 = vsub.f32 %v724, %v852
      %v1085 = vsub.f32 %v726, %v853
      %v1086 = vsub.f32 %v617, %v850
      %v1087 = vsub.f32 %v619, %v851
      %v1088 = vsub.f32 %v730, %v852
      %v1089 = vsub.f32 %v732, %v853
      %v1090 = vsub.f32 %v621, %v850
      %v1091 = vsub.f32 %v623, %v851
      %v1092 = vsub.f32 %v734, %v852
      %v1093 = vsub.f32 %v736, %v853
      %v1094 = vsub.f32 %v627, %v850
      %v1095 = vsub.f32 %v629, %v851
      %v1096 = vsub.f32 %v740, %v852
      %v1097 = vsub.f32 %v742, %v853
      %v1098 = vsub.f32 %v631, %v850
      %v1099 = vsub.f32 %v633, %v851
      %v1100 = vsub.f32 %v744, %v852
      %v1101 = vsub.f32 %v746, %v853
      %v1102 = vmul.f32 %v1038, %v1034
      %v1103 = vmul.f32 %v1039, %v1035
      %v1104 = vmul.f32 %v1040, %v1036
      %v1105 = vmul.f32 %v1041, %v1037
      %v1106 = vmul.f32 %v1042, %v1034
      %v1107 = vmul.f32 %v1043, %v1035
      %v1108 = vmul.f32 %v1044, %v1036
      %v1109 = vmul.f32 %v1045, %v1037
      %v1110 = vmul.f32 %v1046, %v1034
      %v1111 = vmul.f32 %v1047, %v1035
      %v1112 = vmul.f32 %v1048, %v1036
      %v1113 = vmul.f32 %v1049, %v1037
      %v1114 = vmul.f32 %v1050, %v1034
      %v1115 = vmul.f32 %v1051, %v1035
      %v1116 = vmul.f32 %v1052, %v1036
      %v1117 = vmul.f32 %v1053, %v1037
      %v1118 = vmul.f32 %v1054, %v1034
      %v1119 = vmul.f32 %v1055, %v1035
      %v1120 = vmul.f32 %v1056, %v1036
      %v1121 = vmul.f32 %v1057, %v1037
      %v1122 = vmul.f32 %v1058, %v1034
      %v1123 = vmul.f32 %v1059, %v1035
      %v1124 = vmul.f32 %v1060, %v1036
      %v1125 = vmul.f32 %v1061, %v1037
      %v1126 = vmul.f32 %v1062, %v1034
      %v1127 = vmul.f32 %v1063, %v1035
      %v1128 = vmul.f32 %v1064, %v1036
      %v1129 = vmul.f32 %v1065, %v1037
      %v1130 = vmul.f32 %v1066, %v1034
      %v1131 = vmul.f32 %v1067, %v1035
      %v1132 = vmul.f32 %v1068, %v1036
      %v1133 = vmul.f32 %v1069, %v1037
      %v1134 = vmul.f32 %v1070, %v1034
      %v1135 = vmul.f32 %v1071, %v1035
      %v1136 = vmul.f32 %v1072, %v1036
      %v1137 = vmul.f32 %v1073, %v1037
      %v1138 = vmul.f32 %v1074, %v1034
      %v1139 = vmul.f32 %v1075, %v1035
      %v1140 = vmul.f32 %v1076, %v1036
      %v1141 = vmul.f32 %v1077, %v1037
      %v1142 = vmul.f32 %v1078, %v1034
      %v1143 = vmul.f32 %v1079, %v1035
      %v1144 = vmul.f32 %v1080, %v1036
      %v1145 = vmul.f32 %v1081, %v1037
      %v1146 = vmul.f32 %v1082, %v1034
      %v1147 = vmul.f32 %v1083, %v1035
      %v1148 = vmul.f32 %v1084, %v1036
      %v1149 = vmul.f32 %v1085, %v1037
      %v1150 = vmul.f32 %v1086, %v1034
      %v1151 = vmul.f32 %v1087, %v1035
      %v1152 = vmul.f32 %v1088, %v1036
      %v1153 = vmul.f32 %v1089, %v1037
      %v1154 = vmul.f32 %v1090, %v1034
      %v1155 = vmul.f32 %v1091, %v1035
      %v1156 = vmul.f32 %v1092, %v1036
      %v1157 = vmul.f32 %v1093, %v1037
      %v1158 = vmul.f32 %v1094, %v1034
      %v1159 = vmul.f32 %v1095, %v1035
      %v1160 = vmul.f32 %v1096, %v1036
      %v1161 = vmul.f32 %v1097, %v1037
      %v1162 = vmul.f32 %v1098, %v1034
      %v1163 = vmul.f32 %v1099, %v1035
      %v1164 = vmul.f32 %v1100, %v1036
      %v1165 = vmul.f32 %v1101, %v1037
      %1167 = vset.pattern.permute.xlu0 0
      %1168 = vperm.xlu0 %1167, %v266
      %v1169 = vpop.permute.xlu0 %1168
      %1172 = vset.pattern.permute.xlu0 0
      %1173 = vperm.xlu0 %1172, %v267
      %v1174 = vpop.permute.xlu0 %1173
      %1177 = vset.pattern.permute.xlu0 0
      %1178 = vperm.xlu0 %1177, %v268
      %v1179 = vpop.permute.xlu0 %1178
      %1182 = vset.pattern.permute.xlu0 0
      %1183 = vperm.xlu0 %1182, %v269
      %v1184 = vpop.permute.xlu0 %1183
      %1187 = vset.pattern.permute.xlu0 0
      %1188 = vperm.xlu0 %1187, %v270
      %v1189 = vpop.permute.xlu0 %1188
      %1192 = vset.pattern.permute.xlu0 0
      %1193 = vperm.xlu0 %1192, %v271
      %v1194 = vpop.permute.xlu0 %1193
      %1197 = vset.pattern.permute.xlu0 0
      %1198 = vperm.xlu0 %1197, %v272
      %v1199 = vpop.permute.xlu0 %1198
      %1202 = vset.pattern.permute.xlu0 0
      %1203 = vperm.xlu0 %1202, %v273
      %v1204 = vpop.permute.xlu0 %1203
      %1207 = vset.pattern.permute.xlu0 0
      %1208 = vperm.xlu0 %1207, %v274
      %v1209 = vpop.permute.xlu0 %1208
      %1212 = vset.pattern.permute.xlu0 0
      %1213 = vperm.xlu0 %1212, %v275
      %v1214 = vpop.permute.xlu0 %1213
      %1217 = vset.pattern.permute.xlu0 0
      %1218 = vperm.xlu0 %1217, %v276
      %v1219 = vpop.permute.xlu0 %1218
      %1222 = vset.pattern.permute.xlu0 0
      %1223 = vperm.xlu0 %1222, %v277
      %v1224 = vpop.permute.xlu0 %1223
      %1227 = vset.pattern.permute.xlu0 0
      %1228 = vperm.xlu0 %1227, %v278
      %v1229 = vpop.permute.xlu0 %1228
      %1232 = vset.pattern.permute.xlu0 0
      %1233 = vperm.xlu0 %1232, %v279
      %v1234 = vpop.permute.xlu0 %1233
      %1237 = vset.pattern.permute.xlu0 0
      %1238 = vperm.xlu0 %1237, %v280
      %v1239 = vpop.permute.xlu0 %1238
      %1242 = vset.pattern.permute.xlu0 0
      %1243 = vperm.xlu0 %1242, %v281
      %v1244 = vpop.permute.xlu0 %1243
      %v1246 = vmul.f32 %v1102, %v1169
      %v1247 = vmul.f32 %v1103, %v1169
      %v1248 = vmul.f32 %v1104, %v1169
      %v1249 = vmul.f32 %v1105, %v1169
      %v1250 = vmul.f32 %v1106, %v1174
      %v1251 = vmul.f32 %v1107, %v1174
      %v1252 = vmul.f32 %v1108, %v1174
      %v1253 = vmul.f32 %v1109, %v1174
      %v1254 = vmul.f32 %v1110, %v1179
      %v1255 = vmul.f32 %v1111, %v1179
      %v1256 = vmul.f32 %v1112, %v1179
      %v1257 = vmul.f32 %v1113, %v1179
      %v1258 = vmul.f32 %v1114, %v1184
      %v1259 = vmul.f32 %v1115, %v1184
      %v1260 = vmul.f32 %v1116, %v1184
      %v1261 = vmul.f32 %v1117, %v1184
      %v1262 = vmul.f32 %v1118, %v1189
      %v1263 = vmul.f32 %v1119, %v1189
      %v1264 = vmul.f32 %v1120, %v1189
      %v1265 = vmul.f32 %v1121, %v1189
      %v1266 = vmul.f32 %v1122, %v1194
      %v1267 = vmul.f32 %v1123, %v1194
      %v1268 = vmul.f32 %v1124, %v1194
      %v1269 = vmul.f32 %v1125, %v1194
      %v1270 = vmul.f32 %v1126, %v1199
      %v1271 = vmul.f32 %v1127, %v1199
      %v1272 = vmul.f32 %v1128, %v1199
      %v1273 = vmul.f32 %v1129, %v1199
      %v1274 = vmul.f32 %v1130, %v1204
      %v1275 = vmul.f32 %v1131, %v1204
      %v1276 = vmul.f32 %v1132, %v1204
      %v1277 = vmul.f32 %v1133, %v1204
      %v1278 = vmul.f32 %v1134, %v1209
      %v1279 = vmul.f32 %v1135, %v1209
      %v1280 = vmul.f32 %v1136, %v1209
      %v1281 = vmul.f32 %v1137, %v1209
      %v1282 = vmul.f32 %v1138, %v1214
      %v1283 = vmul.f32 %v1139, %v1214
      %v1284 = vmul.f32 %v1140, %v1214
      %v1285 = vmul.f32 %v1141, %v1214
      %v1286 = vmul.f32 %v1142, %v1219
      %v1287 = vmul.f32 %v1143, %v1219
      %v1288 = vmul.f32 %v1144, %v1219
      %v1289 = vmul.f32 %v1145, %v1219
      %v1290 = vmul.f32 %v1146, %v1224
      %v1291 = vmul.f32 %v1147, %v1224
      %v1292 = vmul.f32 %v1148, %v1224
      %v1293 = vmul.f32 %v1149, %v1224
      %v1294 = vmul.f32 %v1150, %v1229
      %v1295 = vmul.f32 %v1151, %v1229
      %v1296 = vmul.f32 %v1152, %v1229
      %v1297 = vmul.f32 %v1153, %v1229
      %v1298 = vmul.f32 %v1154, %v1234
      %v1299 = vmul.f32 %v1155, %v1234
      %v1300 = vmul.f32 %v1156, %v1234
      %v1301 = vmul.f32 %v1157, %v1234
      %v1302 = vmul.f32 %v1158, %v1239
      %v1303 = vmul.f32 %v1159, %v1239
      %v1304 = vmul.f32 %v1160, %v1239
      %v1305 = vmul.f32 %v1161, %v1239
      %v1306 = vmul.f32 %v1162, %v1244
      %v1307 = vmul.f32 %v1163, %v1244
      %v1308 = vmul.f32 %v1164, %v1244
      %v1309 = vmul.f32 %v1165, %v1244
      %1311 = vset.pattern.permute.xlu0 0
      %1312 = vperm.xlu0 %1311, %v282
      %v1313 = vpop.permute.xlu0 %1312
      %1316 = vset.pattern.permute.xlu0 0
      %1317 = vperm.xlu0 %1316, %v283
      %v1318 = vpop.permute.xlu0 %1317
      %1321 = vset.pattern.permute.xlu0 0
      %1322 = vperm.xlu0 %1321, %v284
      %v1323 = vpop.permute.xlu0 %1322
      %1326 = vset.pattern.permute.xlu0 0
      %1327 = vperm.xlu0 %1326, %v285
      %v1328 = vpop.permute.xlu0 %1327
      %1331 = vset.pattern.permute.xlu0 0
      %1332 = vperm.xlu0 %1331, %v286
      %v1333 = vpop.permute.xlu0 %1332
      %1336 = vset.pattern.permute.xlu0 0
      %1337 = vperm.xlu0 %1336, %v287
      %v1338 = vpop.permute.xlu0 %1337
      %1341 = vset.pattern.permute.xlu0 0
      %1342 = vperm.xlu0 %1341, %v288
      %v1343 = vpop.permute.xlu0 %1342
      %1346 = vset.pattern.permute.xlu0 0
      %1347 = vperm.xlu0 %1346, %v289
      %v1348 = vpop.permute.xlu0 %1347
      %1351 = vset.pattern.permute.xlu0 0
      %1352 = vperm.xlu0 %1351, %v290
      %v1353 = vpop.permute.xlu0 %1352
      %1356 = vset.pattern.permute.xlu0 0
      %1357 = vperm.xlu0 %1356, %v291
      %v1358 = vpop.permute.xlu0 %1357
      %1361 = vset.pattern.permute.xlu0 0
      %1362 = vperm.xlu0 %1361, %v292
      %v1363 = vpop.permute.xlu0 %1362
      %1366 = vset.pattern.permute.xlu0 0
      %1367 = vperm.xlu0 %1366, %v293
      %v1368 = vpop.permute.xlu0 %1367
      %1371 = vset.pattern.permute.xlu0 0
      %1372 = vperm.xlu0 %1371, %v294
      %v1373 = vpop.permute.xlu0 %1372
      %1376 = vset.pattern.permute.xlu0 0
      %1377 = vperm.xlu0 %1376, %v295
      %v1378 = vpop.permute.xlu0 %1377
      %1381 = vset.pattern.permute.xlu0 0
      %1382 = vperm.xlu0 %1381, %v296
      %v1383 = vpop.permute.xlu0 %1382
      %1386 = vset.pattern.permute.xlu0 0
      %1387 = vperm.xlu0 %1386, %v297
      %v1388 = vpop.permute.xlu0 %1387
      %v1390 = vadd.f32 %v1246, %v1313
      %v1391 = vadd.f32 %v1247, %v1313
      %v1392 = vadd.f32 %v1248, %v1313
      %v1393 = vadd.f32 %v1249, %v1313
      %v1394 = vadd.f32 %v1250, %v1318
      %v1395 = vadd.f32 %v1251, %v1318
      %v1396 = vadd.f32 %v1252, %v1318
      %v1397 = vadd.f32 %v1253, %v1318
      %v1398 = vadd.f32 %v1254, %v1323
      %v1399 = vadd.f32 %v1255, %v1323
      %v1400 = vadd.f32 %v1256, %v1323
      %v1401 = vadd.f32 %v1257, %v1323
      %v1402 = vadd.f32 %v1258, %v1328
      %v1403 = vadd.f32 %v1259, %v1328
      %v1404 = vadd.f32 %v1260, %v1328
      %v1405 = vadd.f32 %v1261, %v1328
      %v1406 = vadd.f32 %v1262, %v1333
      %v1407 = vadd.f32 %v1263, %v1333
      %v1408 = vadd.f32 %v1264, %v1333
      %v1409 = vadd.f32 %v1265, %v1333
      %v1410 = vadd.f32 %v1266, %v1338
      %v1411 = vadd.f32 %v1267, %v1338
      %v1412 = vadd.f32 %v1268, %v1338
      %v1413 = vadd.f32 %v1269, %v1338
      %v1414 = vadd.f32 %v1270, %v1343
      %v1415 = vadd.f32 %v1271, %v1343
      %v1416 = vadd.f32 %v1272, %v1343
      %v1417 = vadd.f32 %v1273, %v1343
      %v1418 = vadd.f32 %v1274, %v1348
      %v1419 = vadd.f32 %v1275, %v1348
      %v1420 = vadd.f32 %v1276, %v1348
      %v1421 = vadd.f32 %v1277, %v1348
      %v1422 = vadd.f32 %v1278, %v1353
      %v1423 = vadd.f32 %v1279, %v1353
      %v1424 = vadd.f32 %v1280, %v1353
      %v1425 = vadd.f32 %v1281, %v1353
      %v1426 = vadd.f32 %v1282, %v1358
      %v1427 = vadd.f32 %v1283, %v1358
      %v1428 = vadd.f32 %v1284, %v1358
      %v1429 = vadd.f32 %v1285, %v1358
      %v1430 = vadd.f32 %v1286, %v1363
      %v1431 = vadd.f32 %v1287, %v1363
      %v1432 = vadd.f32 %v1288, %v1363
      %v1433 = vadd.f32 %v1289, %v1363
      %v1434 = vadd.f32 %v1290, %v1368
      %v1435 = vadd.f32 %v1291, %v1368
      %v1436 = vadd.f32 %v1292, %v1368
      %v1437 = vadd.f32 %v1293, %v1368
      %v1438 = vadd.f32 %v1294, %v1373
      %v1439 = vadd.f32 %v1295, %v1373
      %v1440 = vadd.f32 %v1296, %v1373
      %v1441 = vadd.f32 %v1297, %v1373
      %v1442 = vadd.f32 %v1298, %v1378
      %v1443 = vadd.f32 %v1299, %v1378
      %v1444 = vadd.f32 %v1300, %v1378
      %v1445 = vadd.f32 %v1301, %v1378
      %v1446 = vadd.f32 %v1302, %v1383
      %v1447 = vadd.f32 %v1303, %v1383
      %v1448 = vadd.f32 %v1304, %v1383
      %v1449 = vadd.f32 %v1305, %v1383
      %v1450 = vadd.f32 %v1306, %v1388
      %v1451 = vadd.f32 %v1307, %v1388
      %v1452 = vadd.f32 %v1308, %v1388
      %v1453 = vadd.f32 %v1309, %v1388
      %v1454 = vadd.f32 %v1390, %v298
      %v1455 = vadd.f32 %v1391, %v299
      %v1456 = vadd.f32 %v1392, %v300
      %v1457 = vadd.f32 %v1393, %v301
      %v1458 = vadd.f32 %v1394, %v302
      %v1459 = vadd.f32 %v1395, %v303
      %v1460 = vadd.f32 %v1396, %v304
      %v1461 = vadd.f32 %v1397, %v305
      %v1462 = vadd.f32 %v1398, %v306
      %v1463 = vadd.f32 %v1399, %v307
      %v1464 = vadd.f32 %v1400, %v308
      %v1465 = vadd.f32 %v1401, %v309
      %v1466 = vadd.f32 %v1402, %v310
      %v1467 = vadd.f32 %v1403, %v311
      %v1468 = vadd.f32 %v1404, %v312
      %v1469 = vadd.f32 %v1405, %v313
      %v1470 = vadd.f32 %v1406, %v314
      %v1471 = vadd.f32 %v1407, %v315
      %v1472 = vadd.f32 %v1408, %v316
      %v1473 = vadd.f32 %v1409, %v317
      %v1474 = vadd.f32 %v1410, %v318
      %v1475 = vadd.f32 %v1411, %v319
      %v1476 = vadd.f32 %v1412, %v320
      %v1477 = vadd.f32 %v1413, %v321
      %v1478 = vadd.f32 %v1414, %v322
      %v1479 = vadd.f32 %v1415, %v323
      %v1480 = vadd.f32 %v1416, %v324
      %v1481 = vadd.f32 %v1417, %v325
      %v1482 = vadd.f32 %v1418, %v326
      %v1483 = vadd.f32 %v1419, %v327
      %v1484 = vadd.f32 %v1420, %v328
      %v1485 = vadd.f32 %v1421, %v329
      %v1486 = vadd.f32 %v1422, %v330
      %v1487 = vadd.f32 %v1423, %v331
      %v1488 = vadd.f32 %v1424, %v332
      %v1489 = vadd.f32 %v1425, %v333
      %v1490 = vadd.f32 %v1426, %v334
      %v1491 = vadd.f32 %v1427, %v335
      %v1492 = vadd.f32 %v1428, %v336
      %v1493 = vadd.f32 %v1429, %v337
      %v1494 = vadd.f32 %v1430, %v338
      %v1495 = vadd.f32 %v1431, %v339
      %v1496 = vadd.f32 %v1432, %v340
      %v1497 = vadd.f32 %v1433, %v341
      %v1498 = vadd.f32 %v1434, %v342
      %v1499 = vadd.f32 %v1435, %v343
      %v1500 = vadd.f32 %v1436, %v344
      %v1501 = vadd.f32 %v1437, %v345
      %v1502 = vadd.f32 %v1438, %v346
      %v1503 = vadd.f32 %v1439, %v347
      %v1504 = vadd.f32 %v1440, %v348
      %v1505 = vadd.f32 %v1441, %v349
      %v1506 = vadd.f32 %v1442, %v350
      %v1507 = vadd.f32 %v1443, %v351
      %v1508 = vadd.f32 %v1444, %v352
      %v1509 = vadd.f32 %v1445, %v353
      %v1510 = vadd.f32 %v1446, %v354
      %v1511 = vadd.f32 %v1447, %v355
      %v1512 = vadd.f32 %v1448, %v356
      %v1513 = vadd.f32 %v1449, %v357
      %v1514 = vadd.f32 %v1450, %v358
      %v1515 = vadd.f32 %v1451, %v359
      %v1516 = vadd.f32 %v1452, %v360
      %v1517 = vadd.f32 %v1453, %v361
      %1518 = vst [vmem:[%s231] sm:$0xff] %v1454
      %1519 = vst [vmem:[%s231 + $0x8] sm:$0xff] %v1455
      %1520 = vst [vmem:[%s231 + $0x10] sm:$0xff] %v1456
      %1521 = vst.msk [vmem:[%s231 + $0x18] sm:$0xff] %vm811, %v1457
      %1522 = vst [vmem:[%s231 + $0x20] sm:$0xff] %v1458
      %1523 = vst [vmem:[%s231 + $0x28] sm:$0xff] %v1459
      %1524 = vst [vmem:[%s231 + $0x30] sm:$0xff] %v1460
      %1525 = vst.msk [vmem:[%s231 + $0x38] sm:$0xff] %vm811, %v1461
      %1526 = vst [vmem:[%s231 + $0x40] sm:$0xff] %v1462
      %1527 = vst [vmem:[%s231 + $0x48] sm:$0xff] %v1463
      %1528 = vst [vmem:[%s231 + $0x50] sm:$0xff] %v1464
      %1529 = vst.msk [vmem:[%s231 + $0x58] sm:$0xff] %vm811, %v1465
      %1530 = vst [vmem:[%s231 + $0x60] sm:$0xff] %v1466
      %1531 = vst [vmem:[%s231 + $0x68] sm:$0xff] %v1467
      %1532 = vst [vmem:[%s231 + $0x70] sm:$0xff] %v1468
      %1533 = vst.msk [vmem:[%s231 + $0x78] sm:$0xff] %vm811, %v1469
      %1534 = vst [vmem:[%s231 + $0x80] sm:$0xff] %v1470
      %1535 = vst [vmem:[%s231 + $0x88] sm:$0xff] %v1471
      %1536 = vst [vmem:[%s231 + $0x90] sm:$0xff] %v1472
      %1537 = vst.msk [vmem:[%s231 + $0x98] sm:$0xff] %vm811, %v1473
      %1538 = vst [vmem:[%s231 + $0xa0] sm:$0xff] %v1474
      %1539 = vst [vmem:[%s231 + $0xa8] sm:$0xff] %v1475
      %1540 = vst [vmem:[%s231 + $0xb0] sm:$0xff] %v1476
      %1541 = vst.msk [vmem:[%s231 + $0xb8] sm:$0xff] %vm811, %v1477
      %1542 = vst [vmem:[%s231 + $0xc0] sm:$0xff] %v1478
      %1543 = vst [vmem:[%s231 + $0xc8] sm:$0xff] %v1479
      %1544 = vst [vmem:[%s231 + $0xd0] sm:$0xff] %v1480
      %1545 = vst.msk [vmem:[%s231 + $0xd8] sm:$0xff] %vm811, %v1481
      %1546 = vst [vmem:[%s231 + $0xe0] sm:$0xff] %v1482
      %1547 = vst [vmem:[%s231 + $0xe8] sm:$0xff] %v1483
      %1548 = vst [vmem:[%s231 + $0xf0] sm:$0xff] %v1484
      %1549 = vst.msk [vmem:[%s231 + $0xf8] sm:$0xff] %vm811, %v1485
      %1550 = vst [vmem:[%s231 + $0x100] sm:$0xff] %v1486
      %1551 = vst [vmem:[%s231 + $0x108] sm:$0xff] %v1487
      %1552 = vst [vmem:[%s231 + $0x110] sm:$0xff] %v1488
      %1553 = vst.msk [vmem:[%s231 + $0x118] sm:$0xff] %vm811, %v1489
      %1554 = vst [vmem:[%s231 + $0x120] sm:$0xff] %v1490
      %1555 = vst [vmem:[%s231 + $0x128] sm:$0xff] %v1491
      %1556 = vst [vmem:[%s231 + $0x130] sm:$0xff] %v1492
      %1557 = vst.msk [vmem:[%s231 + $0x138] sm:$0xff] %vm811, %v1493
      %1558 = vst [vmem:[%s231 + $0x140] sm:$0xff] %v1494
      %1559 = vst [vmem:[%s231 + $0x148] sm:$0xff] %v1495
      %1560 = vst [vmem:[%s231 + $0x150] sm:$0xff] %v1496
      %1561 = vst.msk [vmem:[%s231 + $0x158] sm:$0xff] %vm811, %v1497
      %1562 = vst [vmem:[%s231 + $0x160] sm:$0xff] %v1498
      %1563 = vst [vmem:[%s231 + $0x168] sm:$0xff] %v1499
      %1564 = vst [vmem:[%s231 + $0x170] sm:$0xff] %v1500
      %1565 = vst.msk [vmem:[%s231 + $0x178] sm:$0xff] %vm811, %v1501
      %1566 = vst [vmem:[%s231 + $0x180] sm:$0xff] %v1502
      %1567 = vst [vmem:[%s231 + $0x188] sm:$0xff] %v1503
      %1568 = vst [vmem:[%s231 + $0x190] sm:$0xff] %v1504
      %1569 = vst.msk [vmem:[%s231 + $0x198] sm:$0xff] %vm811, %v1505
      %1570 = vst [vmem:[%s231 + $0x1a0] sm:$0xff] %v1506
      %1571 = vst [vmem:[%s231 + $0x1a8] sm:$0xff] %v1507
      %1572 = vst [vmem:[%s231 + $0x1b0] sm:$0xff] %v1508
      %1573 = vst.msk [vmem:[%s231 + $0x1b8] sm:$0xff] %vm811, %v1509
      %1574 = vst [vmem:[%s231 + $0x1c0] sm:$0xff] %v1510
      %1575 = vst [vmem:[%s231 + $0x1c8] sm:$0xff] %v1511
      %1576 = vst [vmem:[%s231 + $0x1d0] sm:$0xff] %v1512
      %1577 = vst.msk [vmem:[%s231 + $0x1d8] sm:$0xff] %vm811, %v1513
      %1578 = vst [vmem:[%s231 + $0x1e0] sm:$0xff] %v1514
      %1579 = vst [vmem:[%s231 + $0x1e8] sm:$0xff] %v1515
      %1580 = vst [vmem:[%s231 + $0x1f0] sm:$0xff] %v1516
      %1581 = vst.msk [vmem:[%s231 + $0x1f8] sm:$0xff] %vm811, %v1517
      %s1582 = scalar_lea.vmem %s224, 512
      %v1583 = vld [vmem:[%s1582] sm:$0xff]
      %v1584 = vld [vmem:[%s1582 + $0x8] sm:$0xff]
      %v1585 = vld [vmem:[%s1582 + $0x10] sm:$0xff]
      %v1586 = vld [vmem:[%s1582 + $0x18] sm:$0xff]
      %v1587 = vld [vmem:[%s1582 + $0x20] sm:$0xff]
      %v1588 = vld [vmem:[%s1582 + $0x28] sm:$0xff]
      %v1589 = vld [vmem:[%s1582 + $0x30] sm:$0xff]
      %v1590 = vld [vmem:[%s1582 + $0x38] sm:$0xff]
      %v1591 = vld [vmem:[%s1582 + $0x40] sm:$0xff]
      %v1592 = vld [vmem:[%s1582 + $0x48] sm:$0xff]
      %v1593 = vld [vmem:[%s1582 + $0x50] sm:$0xff]
      %v1594 = vld [vmem:[%s1582 + $0x58] sm:$0xff]
      %v1595 = vld [vmem:[%s1582 + $0x60] sm:$0xff]
      %v1596 = vld [vmem:[%s1582 + $0x68] sm:$0xff]
      %v1597 = vld [vmem:[%s1582 + $0x70] sm:$0xff]
      %v1598 = vld [vmem:[%s1582 + $0x78] sm:$0xff]
      %v1599 = vld [vmem:[%s1582 + $0x80] sm:$0xff]
      %v1600 = vld [vmem:[%s1582 + $0x88] sm:$0xff]
      %v1601 = vld [vmem:[%s1582 + $0x90] sm:$0xff]
      %v1602 = vld [vmem:[%s1582 + $0x98] sm:$0xff]
      %v1603 = vld [vmem:[%s1582 + $0xa0] sm:$0xff]
      %v1604 = vld [vmem:[%s1582 + $0xa8] sm:$0xff]
      %v1605 = vld [vmem:[%s1582 + $0xb0] sm:$0xff]
      %v1606 = vld [vmem:[%s1582 + $0xb8] sm:$0xff]
      %v1607 = vld [vmem:[%s1582 + $0xc0] sm:$0xff]
      %v1608 = vld [vmem:[%s1582 + $0xc8] sm:$0xff]
      %v1609 = vld [vmem:[%s1582 + $0xd0] sm:$0xff]
      %v1610 = vld [vmem:[%s1582 + $0xd8] sm:$0xff]
      %v1611 = vld [vmem:[%s1582 + $0xe0] sm:$0xff]
      %v1612 = vld [vmem:[%s1582 + $0xe8] sm:$0xff]
      %v1613 = vld [vmem:[%s1582 + $0xf0] sm:$0xff]
      %v1614 = vld [vmem:[%s1582 + $0xf8] sm:$0xff]
      %v1615 = vld [vmem:[%s1582 + $0x100] sm:$0xff]
      %v1616 = vld [vmem:[%s1582 + $0x108] sm:$0xff]
      %v1617 = vld [vmem:[%s1582 + $0x110] sm:$0xff]
      %v1618 = vld [vmem:[%s1582 + $0x118] sm:$0xff]
      %v1619 = vld [vmem:[%s1582 + $0x120] sm:$0xff]
      %v1620 = vld [vmem:[%s1582 + $0x128] sm:$0xff]
      %v1621 = vld [vmem:[%s1582 + $0x130] sm:$0xff]
      %v1622 = vld [vmem:[%s1582 + $0x138] sm:$0xff]
      %v1623 = vld [vmem:[%s1582 + $0x140] sm:$0xff]
      %v1624 = vld [vmem:[%s1582 + $0x148] sm:$0xff]
      %v1625 = vld [vmem:[%s1582 + $0x150] sm:$0xff]
      %v1626 = vld [vmem:[%s1582 + $0x158] sm:$0xff]
      %v1627 = vld [vmem:[%s1582 + $0x160] sm:$0xff]
      %v1628 = vld [vmem:[%s1582 + $0x168] sm:$0xff]
      %v1629 = vld [vmem:[%s1582 + $0x170] sm:$0xff]
      %v1630 = vld [vmem:[%s1582 + $0x178] sm:$0xff]
      %v1631 = vld [vmem:[%s1582 + $0x180] sm:$0xff]
      %v1632 = vld [vmem:[%s1582 + $0x188] sm:$0xff]
      %v1633 = vld [vmem:[%s1582 + $0x190] sm:$0xff]
      %v1634 = vld [vmem:[%s1582 + $0x198] sm:$0xff]
      %v1635 = vld [vmem:[%s1582 + $0x1a0] sm:$0xff]
      %v1636 = vld [vmem:[%s1582 + $0x1a8] sm:$0xff]
      %v1637 = vld [vmem:[%s1582 + $0x1b0] sm:$0xff]
      %v1638 = vld [vmem:[%s1582 + $0x1b8] sm:$0xff]
      %v1639 = vld [vmem:[%s1582 + $0x1c0] sm:$0xff]
      %v1640 = vld [vmem:[%s1582 + $0x1c8] sm:$0xff]
      %v1641 = vld [vmem:[%s1582 + $0x1d0] sm:$0xff]
      %v1642 = vld [vmem:[%s1582 + $0x1d8] sm:$0xff]
      %v1643 = vld [vmem:[%s1582 + $0x1e0] sm:$0xff]
      %v1644 = vld [vmem:[%s1582 + $0x1e8] sm:$0xff]
      %v1645 = vld [vmem:[%s1582 + $0x1f0] sm:$0xff]
      %v1646 = vld [vmem:[%s1582 + $0x1f8] sm:$0xff]
      %v1647 = vpack.c.bf16 %v1587, %v1583
      %v1648 = vpack.c.bf16 %v1588, %v1584
      %v1649 = vpack.c.bf16 %v1589, %v1585
      %v1650 = vpack.c.bf16 %v1590, %v1586
      %v1651 = vpack.c.bf16 %v1595, %v1591
      %v1652 = vpack.c.bf16 %v1596, %v1592
      %v1653 = vpack.c.bf16 %v1597, %v1593
      %v1654 = vpack.c.bf16 %v1598, %v1594
      %v1655 = vpack.c.bf16 %v1603, %v1599
      %v1656 = vpack.c.bf16 %v1604, %v1600
      %v1657 = vpack.c.bf16 %v1605, %v1601
      %v1658 = vpack.c.bf16 %v1606, %v1602
      %v1659 = vpack.c.bf16 %v1611, %v1607
      %v1660 = vpack.c.bf16 %v1612, %v1608
      %v1661 = vpack.c.bf16 %v1613, %v1609
      %v1662 = vpack.c.bf16 %v1614, %v1610
      %v1663 = vpack.c.bf16 %v1619, %v1615
      %v1664 = vpack.c.bf16 %v1620, %v1616
      %v1665 = vpack.c.bf16 %v1621, %v1617
      %v1666 = vpack.c.bf16 %v1622, %v1618
      %v1667 = vpack.c.bf16 %v1627, %v1623
      %v1668 = vpack.c.bf16 %v1628, %v1624
      %v1669 = vpack.c.bf16 %v1629, %v1625
      %v1670 = vpack.c.bf16 %v1630, %v1626
      %v1671 = vpack.c.bf16 %v1635, %v1631
      %v1672 = vpack.c.bf16 %v1636, %v1632
      %v1673 = vpack.c.bf16 %v1637, %v1633
      %v1674 = vpack.c.bf16 %v1638, %v1634
      %v1675 = vpack.c.bf16 %v1643, %v1639
      %v1676 = vpack.c.bf16 %v1644, %v1640
      %v1677 = vpack.c.bf16 %v1645, %v1641
      %v1678 = vpack.c.bf16 %v1646, %v1642
      %1679 = vmatprep.subr.bf16.mxu0 %v1676
      %1680 = vmatpush1.bf16.msra.mxu0 %v1675
      %1681 = vmatprep.subr.bf16.mxu0 %v1672
      %1682 = vmatpush1.bf16.msra.mxu0 %v1671
      %1683 = vmatprep.subr.bf16.mxu0 %v1668
      %1684 = vmatpush1.bf16.msra.mxu0 %v1667
      %1685 = vmatprep.subr.bf16.mxu0 %v1664
      %1686 = vmatpush1.bf16.msra.mxu0 %v1663
      %1687 = vmatprep.subr.bf16.mxu0 %v1660
      %1688 = vmatpush1.bf16.msra.mxu0 %v1659
      %1689 = vmatprep.subr.bf16.mxu0 %v1656
      %1690 = vmatpush1.bf16.msra.mxu0 %v1655
      %1691 = vmatprep.subr.bf16.mxu0 %v1652
      %1692 = vmatpush1.bf16.msra.mxu0 %v1651
      %1693 = vmatprep.subr.bf16.mxu0 %v1648
      %1694 = vmatpush1.bf16.msra.mxu0 %v1647
      %1695 = vmatprep.subr.bf16.mxu0 0
      %1696 = vmatpush2.bf16.msra.mxu0 0
      %1697 = vmatprep.subr.bf16.mxu0 0
      %1698 = vmatpush2.bf16.msra.mxu0 0
      %1699 = vmatprep.subr.bf16.mxu0 0
      %1700 = vmatpush2.bf16.msra.mxu0 0
      %1701 = vmatprep.subr.bf16.mxu0 0
      %1702 = vmatpush2.bf16.msra.mxu0 0
      %1703 = vmatprep.subr.bf16.mxu0 0
      %1704 = vmatpush2.bf16.msra.mxu0 0
      %1705 = vmatprep.subr.bf16.mxu0 0
      %1706 = vmatpush2.bf16.msra.mxu0 0
      %1707 = vmatprep.subr.bf16.mxu0 0
      %1708 = vmatpush2.bf16.msra.mxu0 0
      %1709 = vmatprep.subr.bf16.mxu0 0
      %1710 = vmatpush2.bf16.msra.mxu0 0
      %1711 = vmatprep.mubr.bf16.mxu0 0
      %1712 = vmatmul.mubr.bf16.gmra.mxu0 %v506
      %v1713 = vpop.f32.mrf.mxu0
      %v1714 = vadd.f32 %v397, %v1713
      %v1715 = vpop.f32.mrf.mxu0
      %v1716 = vadd.f32 %v397, %v1715
      %v1717 = vpop.f32.mrf.mxu0
      %v1718 = vadd.f32 %v402, %v1717
      %v1719 = vpop.f32.mrf.mxu0
      %v1720 = vadd.f32 %v402, %v1719
      %1721 = vmatprep.mubr.bf16.mxu0 0
      %1722 = vmatmul.mubr.bf16.gmra.mxu0 %v507
      %v1723 = vpop.f32.mrf.mxu0
      %v1724 = vadd.f32 %v407, %v1723
      %v1725 = vpop.f32.mrf.mxu0
      %v1726 = vadd.f32 %v407, %v1725
      %v1727 = vpop.f32.mrf.mxu0
      %v1728 = vadd.f32 %v412, %v1727
      %v1729 = vpop.f32.mrf.mxu0
      %v1730 = vadd.f32 %v412, %v1729
      %1731 = vmatprep.mubr.bf16.mxu0 0
      %1732 = vmatmul.mubr.bf16.gmra.mxu0 %v508
      %v1733 = vpop.f32.mrf.mxu0
      %v1734 = vadd.f32 %v417, %v1733
      %v1735 = vpop.f32.mrf.mxu0
      %v1736 = vadd.f32 %v417, %v1735
      %v1737 = vpop.f32.mrf.mxu0
      %v1738 = vadd.f32 %v422, %v1737
      %v1739 = vpop.f32.mrf.mxu0
      %v1740 = vadd.f32 %v422, %v1739
      %1741 = vmatprep.mubr.bf16.mxu0 0
      %1742 = vmatmul.mubr.bf16.gmra.mxu0 %v509
      %v1743 = vpop.f32.mrf.mxu0
      %v1744 = vadd.f32 %v427, %v1743
      %v1745 = vpop.f32.mrf.mxu0
      %v1746 = vadd.f32 %v427, %v1745
      %v1747 = vpop.f32.mrf.mxu0
      %v1748 = vadd.f32 %v432, %v1747
      %v1749 = vpop.f32.mrf.mxu0
      %v1750 = vadd.f32 %v432, %v1749
      %1751 = vmatprep.mubr.bf16.mxu0 0
      %1752 = vmatmul.mubr.bf16.gmra.mxu0 %v510
      %v1753 = vpop.f32.mrf.mxu0
      %v1754 = vadd.f32 %v437, %v1753
      %v1755 = vpop.f32.mrf.mxu0
      %v1756 = vadd.f32 %v437, %v1755
      %v1757 = vpop.f32.mrf.mxu0
      %v1758 = vadd.f32 %v442, %v1757
      %v1759 = vpop.f32.mrf.mxu0
      %v1760 = vadd.f32 %v442, %v1759
      %1761 = vmatprep.mubr.bf16.mxu0 0
      %1762 = vmatmul.mubr.bf16.gmra.mxu0 %v511
      %v1763 = vpop.f32.mrf.mxu0
      %v1764 = vadd.f32 %v447, %v1763
      %v1765 = vpop.f32.mrf.mxu0
      %v1766 = vadd.f32 %v447, %v1765
      %v1767 = vpop.f32.mrf.mxu0
      %v1768 = vadd.f32 %v452, %v1767
      %v1769 = vpop.f32.mrf.mxu0
      %v1770 = vadd.f32 %v452, %v1769
      %1771 = vmatprep.mubr.bf16.mxu0 0
      %1772 = vmatmul.mubr.bf16.gmra.mxu0 %v512
      %v1773 = vpop.f32.mrf.mxu0
      %v1774 = vadd.f32 %v457, %v1773
      %v1775 = vpop.f32.mrf.mxu0
      %v1776 = vadd.f32 %v457, %v1775
      %v1777 = vpop.f32.mrf.mxu0
      %v1778 = vadd.f32 %v462, %v1777
      %v1779 = vpop.f32.mrf.mxu0
      %v1780 = vadd.f32 %v462, %v1779
      %1781 = vmatprep.mubr.bf16.mxu0 0
      %1782 = vmatmul.mubr.bf16.gmra.mxu0 %v513
      %v1783 = vpop.f32.mrf.mxu0
      %v1784 = vadd.f32 %v467, %v1783
      %v1785 = vpop.f32.mrf.mxu0
      %v1786 = vadd.f32 %v467, %v1785
      %v1787 = vpop.f32.mrf.mxu0
      %v1788 = vadd.f32 %v472, %v1787
      %v1789 = vpop.f32.mrf.mxu0
      %v1790 = vadd.f32 %v472, %v1789
      %1791 = vdwg.mxu0
      %1792 = vmatprep.subr.bf16.mxu0 %v1678
      %1793 = vmatpush1.bf16.msra.mxu0 %v1677
      %1794 = vmatprep.subr.bf16.mxu0 %v1674
      %1795 = vmatpush1.bf16.msra.mxu0 %v1673
      %1796 = vmatprep.subr.bf16.mxu0 %v1670
      %1797 = vmatpush1.bf16.msra.mxu0 %v1669
      %1798 = vmatprep.subr.bf16.mxu0 %v1666
      %1799 = vmatpush1.bf16.msra.mxu0 %v1665
      %1800 = vmatprep.subr.bf16.mxu0 %v1662
      %1801 = vmatpush1.bf16.msra.mxu0 %v1661
      %1802 = vmatprep.subr.bf16.mxu0 %v1658
      %1803 = vmatpush1.bf16.msra.mxu0 %v1657
      %1804 = vmatprep.subr.bf16.mxu0 %v1654
      %1805 = vmatpush1.bf16.msra.mxu0 %v1653
      %1806 = vmatprep.subr.bf16.mxu0 %v1650
      %1807 = vmatpush1.bf16.msra.mxu0 %v1649
      %1808 = vmatprep.subr.bf16.mxu0 0
      %1809 = vmatpush2.bf16.msra.mxu0 0
      %1810 = vmatprep.subr.bf16.mxu0 0
      %1811 = vmatpush2.bf16.msra.mxu0 0
      %1812 = vmatprep.subr.bf16.mxu0 0
      %1813 = vmatpush2.bf16.msra.mxu0 0
      %1814 = vmatprep.subr.bf16.mxu0 0
      %1815 = vmatpush2.bf16.msra.mxu0 0
      %1816 = vmatprep.subr.bf16.mxu0 0
      %1817 = vmatpush2.bf16.msra.mxu0 0
      %1818 = vmatprep.subr.bf16.mxu0 0
      %1819 = vmatpush2.bf16.msra.mxu0 0
      %1820 = vmatprep.subr.bf16.mxu0 0
      %1821 = vmatpush2.bf16.msra.mxu0 0
      %1822 = vmatprep.subr.bf16.mxu0 0
      %1823 = vmatpush2.bf16.msra.mxu0 0
      %1824 = vmatprep.mubr.bf16.mxu0 0
      %1825 = vmatmul.mubr.bf16.gmra.mxu0 %v506
      %v1826 = vpop.f32.mrf.mxu0
      %v1827 = vadd.f32 %v397, %v1826
      %v1828 = vpop.f32.mrf.mxu0
      %v1829 = vadd.f32 %v397, %v1828
      %v1830 = vpop.f32.mrf.mxu0
      %v1831 = vadd.f32 %v402, %v1830
      %v1832 = vpop.f32.mrf.mxu0
      %v1833 = vadd.f32 %v402, %v1832
      %1834 = vmatprep.mubr.bf16.mxu0 0
      %1835 = vmatmul.mubr.bf16.gmra.mxu0 %v507
      %v1836 = vpop.f32.mrf.mxu0
      %v1837 = vadd.f32 %v407, %v1836
      %v1838 = vpop.f32.mrf.mxu0
      %v1839 = vadd.f32 %v407, %v1838
      %v1840 = vpop.f32.mrf.mxu0
      %v1841 = vadd.f32 %v412, %v1840
      %v1842 = vpop.f32.mrf.mxu0
      %v1843 = vadd.f32 %v412, %v1842
      %1844 = vmatprep.mubr.bf16.mxu0 0
      %1845 = vmatmul.mubr.bf16.gmra.mxu0 %v508
      %v1846 = vpop.f32.mrf.mxu0
      %v1847 = vadd.f32 %v417, %v1846
      %v1848 = vpop.f32.mrf.mxu0
      %v1849 = vadd.f32 %v417, %v1848
      %v1850 = vpop.f32.mrf.mxu0
      %v1851 = vadd.f32 %v422, %v1850
      %v1852 = vpop.f32.mrf.mxu0
      %v1853 = vadd.f32 %v422, %v1852
      %1854 = vmatprep.mubr.bf16.mxu0 0
      %1855 = vmatmul.mubr.bf16.gmra.mxu0 %v509
      %v1856 = vpop.f32.mrf.mxu0
      %v1857 = vadd.f32 %v427, %v1856
      %v1858 = vpop.f32.mrf.mxu0
      %v1859 = vadd.f32 %v427, %v1858
      %v1860 = vpop.f32.mrf.mxu0
      %v1861 = vadd.f32 %v432, %v1860
      %v1862 = vpop.f32.mrf.mxu0
      %v1863 = vadd.f32 %v432, %v1862
      %1864 = vmatprep.mubr.bf16.mxu0 0
      %1865 = vmatmul.mubr.bf16.gmra.mxu0 %v510
      %v1866 = vpop.f32.mrf.mxu0
      %v1867 = vadd.f32 %v437, %v1866
      %v1868 = vpop.f32.mrf.mxu0
      %v1869 = vadd.f32 %v437, %v1868
      %v1870 = vpop.f32.mrf.mxu0
      %v1871 = vadd.f32 %v442, %v1870
      %v1872 = vpop.f32.mrf.mxu0
      %v1873 = vadd.f32 %v442, %v1872
      %1874 = vmatprep.mubr.bf16.mxu0 0
      %1875 = vmatmul.mubr.bf16.gmra.mxu0 %v511
      %v1876 = vpop.f32.mrf.mxu0
      %v1877 = vadd.f32 %v447, %v1876
      %v1878 = vpop.f32.mrf.mxu0
      %v1879 = vadd.f32 %v447, %v1878
      %v1880 = vpop.f32.mrf.mxu0
      %v1881 = vadd.f32 %v452, %v1880
      %v1882 = vpop.f32.mrf.mxu0
      %v1883 = vadd.f32 %v452, %v1882
      %1884 = vmatprep.mubr.bf16.mxu0 0
      %1885 = vmatmul.mubr.bf16.gmra.mxu0 %v512
      %v1886 = vpop.f32.mrf.mxu0
      %v1887 = vadd.f32 %v457, %v1886
      %v1888 = vpop.f32.mrf.mxu0
      %v1889 = vadd.f32 %v457, %v1888
      %v1890 = vpop.f32.mrf.mxu0
      %v1891 = vadd.f32 %v462, %v1890
      %v1892 = vpop.f32.mrf.mxu0
      %v1893 = vadd.f32 %v462, %v1892
      %1894 = vmatprep.mubr.bf16.mxu0 0
      %1895 = vmatmul.mubr.bf16.gmra.mxu0 %v513
      %v1896 = vpop.f32.mrf.mxu0
      %v1897 = vadd.f32 %v467, %v1896
      %v1898 = vpop.f32.mrf.mxu0
      %v1899 = vadd.f32 %v467, %v1898
      %v1900 = vpop.f32.mrf.mxu0
      %v1901 = vadd.f32 %v472, %v1900
      %v1902 = vpop.f32.mrf.mxu0
      %v1903 = vadd.f32 %v472, %v1902
      %1904 = vdwg.mxu0
      %v1905 = vadd.f32 %v1714, %v1718
      %v1906 = vadd.f32 %v1905, %v1724
      %v1907 = vadd.f32 %v1906, %v1728
      %v1908 = vadd.f32 %v1907, %v1734
      %v1909 = vadd.f32 %v1908, %v1738
      %v1910 = vadd.f32 %v1909, %v1744
      %v1911 = vadd.f32 %v1910, %v1748
      %v1912 = vadd.f32 %v1911, %v1754
      %v1913 = vadd.f32 %v1912, %v1758
      %v1914 = vadd.f32 %v1913, %v1764
      %v1915 = vadd.f32 %v1914, %v1768
      %v1916 = vadd.f32 %v1915, %v1774
      %v1917 = vadd.f32 %v1916, %v1778
      %v1918 = vadd.f32 %v1917, %v1784
      %v1919 = vadd.f32 %v1918, %v1788
      %v1920 = vrot.slane %v1919, 4
      %v1921 = vadd.f32 %v1919, %v1920
      %v1922 = vrot.slane %v1921, 2
      %v1923 = vadd.f32 %v1921, %v1922
      %v1924 = vrot.slane %v1923, 1
      %v1925 = vadd.f32 %v1923, %v1924
      %v1926 = vadd.f32 %v1716, %v1720
      %v1927 = vadd.f32 %v1926, %v1726
      %v1928 = vadd.f32 %v1927, %v1730
      %v1929 = vadd.f32 %v1928, %v1736
      %v1930 = vadd.f32 %v1929, %v1740
      %v1931 = vadd.f32 %v1930, %v1746
      %v1932 = vadd.f32 %v1931, %v1750
      %v1933 = vadd.f32 %v1932, %v1756
      %v1934 = vadd.f32 %v1933, %v1760
      %v1935 = vadd.f32 %v1934, %v1766
      %v1936 = vadd.f32 %v1935, %v1770
      %v1937 = vadd.f32 %v1936, %v1776
      %v1938 = vadd.f32 %v1937, %v1780
      %v1939 = vadd.f32 %v1938, %v1786
      %v1940 = vadd.f32 %v1939, %v1790
      %v1941 = vrot.slane %v1940, 4
      %v1942 = vadd.f32 %v1940, %v1941
      %v1943 = vrot.slane %v1942, 2
      %v1944 = vadd.f32 %v1942, %v1943
      %v1945 = vrot.slane %v1944, 1
      %v1946 = vadd.f32 %v1944, %v1945
      %v1947 = vadd.f32 %v1827, %v1831
      %v1948 = vadd.f32 %v1947, %v1837
      %v1949 = vadd.f32 %v1948, %v1841
      %v1950 = vadd.f32 %v1949, %v1847
      %v1951 = vadd.f32 %v1950, %v1851
      %v1952 = vadd.f32 %v1951, %v1857
      %v1953 = vadd.f32 %v1952, %v1861
      %v1954 = vadd.f32 %v1953, %v1867
      %v1955 = vadd.f32 %v1954, %v1871
      %v1956 = vadd.f32 %v1955, %v1877
      %v1957 = vadd.f32 %v1956, %v1881
      %v1958 = vadd.f32 %v1957, %v1887
      %v1959 = vadd.f32 %v1958, %v1891
      %v1960 = vadd.f32 %v1959, %v1897
      %v1961 = vadd.f32 %v1960, %v1901
      %v1962 = vrot.slane %v1961, 4
      %v1963 = vadd.f32 %v1961, %v1962
      %v1964 = vrot.slane %v1963, 2
      %v1965 = vadd.f32 %v1963, %v1964
      %v1966 = vrot.slane %v1965, 1
      %v1967 = vadd.f32 %v1965, %v1966
      %v1968 = vsel %vm811, %v1829, 0.0
      %v1969 = vsel %vm811, %v1833, 0.0
      %v1970 = vadd.f32 %v1968, %v1969
      %v1971 = vsel %vm811, %v1839, 0.0
      %v1972 = vadd.f32 %v1970, %v1971
      %v1973 = vsel %vm811, %v1843, 0.0
      %v1974 = vadd.f32 %v1972, %v1973
      %v1975 = vsel %vm811, %v1849, 0.0
      %v1976 = vadd.f32 %v1974, %v1975
      %v1977 = vsel %vm811, %v1853, 0.0
      %v1978 = vadd.f32 %v1976, %v1977
      %v1979 = vsel %vm811, %v1859, 0.0
      %v1980 = vadd.f32 %v1978, %v1979
      %v1981 = vsel %vm811, %v1863, 0.0
      %v1982 = vadd.f32 %v1980, %v1981
      %v1983 = vsel %vm811, %v1869, 0.0
      %v1984 = vadd.f32 %v1982, %v1983
      %v1985 = vsel %vm811, %v1873, 0.0
      %v1986 = vadd.f32 %v1984, %v1985
      %v1987 = vsel %vm811, %v1879, 0.0
      %v1988 = vadd.f32 %v1986, %v1987
      %v1989 = vsel %vm811, %v1883, 0.0
      %v1990 = vadd.f32 %v1988, %v1989
      %v1991 = vsel %vm811, %v1889, 0.0
      %v1992 = vadd.f32 %v1990, %v1991
      %v1993 = vsel %vm811, %v1893, 0.0
      %v1994 = vadd.f32 %v1992, %v1993
      %v1995 = vsel %vm811, %v1899, 0.0
      %v1996 = vadd.f32 %v1994, %v1995
      %v1997 = vsel %vm811, %v1903, 0.0
      %v1998 = vadd.f32 %v1996, %v1997
      %v1999 = vrot.slane %v1998, 4
      %v2000 = vadd.f32 %v1998, %v1999
      %v2001 = vrot.slane %v2000, 2
      %v2002 = vadd.f32 %v2000, %v2001
      %v2003 = vrot.slane %v2002, 1
      %v2004 = vadd.f32 %v2002, %v2003
      %v2005 = vmul.f32 %v1925, %v849
      %v2006 = vmul.f32 %v1946, %v849
      %v2007 = vmul.f32 %v1967, %v849
      %v2008 = vmul.f32 %v2004, %v849
      %v2009 = vmul.f32 %v1714, %v1714
      %v2010 = vmul.f32 %v1716, %v1716
      %v2011 = vmul.f32 %v1827, %v1827
      %v2012 = vmul.f32 %v1829, %v1829
      %v2013 = vmul.f32 %v1718, %v1718
      %v2014 = vmul.f32 %v1720, %v1720
      %v2015 = vmul.f32 %v1831, %v1831
      %v2016 = vmul.f32 %v1833, %v1833
      %v2017 = vmul.f32 %v1724, %v1724
      %v2018 = vmul.f32 %v1726, %v1726
      %v2019 = vmul.f32 %v1837, %v1837
      %v2020 = vmul.f32 %v1839, %v1839
      %v2021 = vmul.f32 %v1728, %v1728
      %v2022 = vmul.f32 %v1730, %v1730
      %v2023 = vmul.f32 %v1841, %v1841
      %v2024 = vmul.f32 %v1843, %v1843
      %v2025 = vmul.f32 %v1734, %v1734
      %v2026 = vmul.f32 %v1736, %v1736
      %v2027 = vmul.f32 %v1847, %v1847
      %v2028 = vmul.f32 %v1849, %v1849
      %v2029 = vmul.f32 %v1738, %v1738
      %v2030 = vmul.f32 %v1740, %v1740
      %v2031 = vmul.f32 %v1851, %v1851
      %v2032 = vmul.f32 %v1853, %v1853
      %v2033 = vmul.f32 %v1744, %v1744
      %v2034 = vmul.f32 %v1746, %v1746
      %v2035 = vmul.f32 %v1857, %v1857
      %v2036 = vmul.f32 %v1859, %v1859
      %v2037 = vmul.f32 %v1748, %v1748
      %v2038 = vmul.f32 %v1750, %v1750
      %v2039 = vmul.f32 %v1861, %v1861
      %v2040 = vmul.f32 %v1863, %v1863
      %v2041 = vmul.f32 %v1754, %v1754
      %v2042 = vmul.f32 %v1756, %v1756
      %v2043 = vmul.f32 %v1867, %v1867
      %v2044 = vmul.f32 %v1869, %v1869
      %v2045 = vmul.f32 %v1758, %v1758
      %v2046 = vmul.f32 %v1760, %v1760
      %v2047 = vmul.f32 %v1871, %v1871
      %v2048 = vmul.f32 %v1873, %v1873
      %v2049 = vmul.f32 %v1764, %v1764
      %v2050 = vmul.f32 %v1766, %v1766
      %v2051 = vmul.f32 %v1877, %v1877
      %v2052 = vmul.f32 %v1879, %v1879
      %v2053 = vmul.f32 %v1768, %v1768
      %v2054 = vmul.f32 %v1770, %v1770
      %v2055 = vmul.f32 %v1881, %v1881
      %v2056 = vmul.f32 %v1883, %v1883
      %v2057 = vmul.f32 %v1774, %v1774
      %v2058 = vmul.f32 %v1776, %v1776
      %v2059 = vmul.f32 %v1887, %v1887
      %v2060 = vmul.f32 %v1889, %v1889
      %v2061 = vmul.f32 %v1778, %v1778
      %v2062 = vmul.f32 %v1780, %v1780
      %v2063 = vmul.f32 %v1891, %v1891
      %v2064 = vmul.f32 %v1893, %v1893
      %v2065 = vmul.f32 %v1784, %v1784
      %v2066 = vmul.f32 %v1786, %v1786
      %v2067 = vmul.f32 %v1897, %v1897
      %v2068 = vmul.f32 %v1899, %v1899
      %v2069 = vmul.f32 %v1788, %v1788
      %v2070 = vmul.f32 %v1790, %v1790
      %v2071 = vmul.f32 %v1901, %v1901
      %v2072 = vmul.f32 %v1903, %v1903
      %v2073 = vadd.f32 %v2009, %v2013
      %v2074 = vadd.f32 %v2073, %v2017
      %v2075 = vadd.f32 %v2074, %v2021
      %v2076 = vadd.f32 %v2075, %v2025
      %v2077 = vadd.f32 %v2076, %v2029
      %v2078 = vadd.f32 %v2077, %v2033
      %v2079 = vadd.f32 %v2078, %v2037
      %v2080 = vadd.f32 %v2079, %v2041
      %v2081 = vadd.f32 %v2080, %v2045
      %v2082 = vadd.f32 %v2081, %v2049
      %v2083 = vadd.f32 %v2082, %v2053
      %v2084 = vadd.f32 %v2083, %v2057
      %v2085 = vadd.f32 %v2084, %v2061
      %v2086 = vadd.f32 %v2085, %v2065
      %v2087 = vadd.f32 %v2086, %v2069
      %v2088 = vrot.slane %v2087, 4
      %v2089 = vadd.f32 %v2087, %v2088
      %v2090 = vrot.slane %v2089, 2
      %v2091 = vadd.f32 %v2089, %v2090
      %v2092 = vrot.slane %v2091, 1
      %v2093 = vadd.f32 %v2091, %v2092
      %v2094 = vadd.f32 %v2010, %v2014
      %v2095 = vadd.f32 %v2094, %v2018
      %v2096 = vadd.f32 %v2095, %v2022
      %v2097 = vadd.f32 %v2096, %v2026
      %v2098 = vadd.f32 %v2097, %v2030
      %v2099 = vadd.f32 %v2098, %v2034
      %v2100 = vadd.f32 %v2099, %v2038
      %v2101 = vadd.f32 %v2100, %v2042
      %v2102 = vadd.f32 %v2101, %v2046
      %v2103 = vadd.f32 %v2102, %v2050
      %v2104 = vadd.f32 %v2103, %v2054
      %v2105 = vadd.f32 %v2104, %v2058
      %v2106 = vadd.f32 %v2105, %v2062
      %v2107 = vadd.f32 %v2106, %v2066
      %v2108 = vadd.f32 %v2107, %v2070
      %v2109 = vrot.slane %v2108, 4
      %v2110 = vadd.f32 %v2108, %v2109
      %v2111 = vrot.slane %v2110, 2
      %v2112 = vadd.f32 %v2110, %v2111
      %v2113 = vrot.slane %v2112, 1
      %v2114 = vadd.f32 %v2112, %v2113
      %v2115 = vadd.f32 %v2011, %v2015
      %v2116 = vadd.f32 %v2115, %v2019
      %v2117 = vadd.f32 %v2116, %v2023
      %v2118 = vadd.f32 %v2117, %v2027
      %v2119 = vadd.f32 %v2118, %v2031
      %v2120 = vadd.f32 %v2119, %v2035
      %v2121 = vadd.f32 %v2120, %v2039
      %v2122 = vadd.f32 %v2121, %v2043
      %v2123 = vadd.f32 %v2122, %v2047
      %v2124 = vadd.f32 %v2123, %v2051
      %v2125 = vadd.f32 %v2124, %v2055
      %v2126 = vadd.f32 %v2125, %v2059
      %v2127 = vadd.f32 %v2126, %v2063
      %v2128 = vadd.f32 %v2127, %v2067
      %v2129 = vadd.f32 %v2128, %v2071
      %v2130 = vrot.slane %v2129, 4
      %v2131 = vadd.f32 %v2129, %v2130
      %v2132 = vrot.slane %v2131, 2
      %v2133 = vadd.f32 %v2131, %v2132
      %v2134 = vrot.slane %v2133, 1
      %v2135 = vadd.f32 %v2133, %v2134
      %v2136 = vsel %vm811, %v2012, 0.0
      %v2137 = vsel %vm811, %v2016, 0.0
      %v2138 = vadd.f32 %v2136, %v2137
      %v2139 = vsel %vm811, %v2020, 0.0
      %v2140 = vadd.f32 %v2138, %v2139
      %v2141 = vsel %vm811, %v2024, 0.0
      %v2142 = vadd.f32 %v2140, %v2141
      %v2143 = vsel %vm811, %v2028, 0.0
      %v2144 = vadd.f32 %v2142, %v2143
      %v2145 = vsel %vm811, %v2032, 0.0
      %v2146 = vadd.f32 %v2144, %v2145
      %v2147 = vsel %vm811, %v2036, 0.0
      %v2148 = vadd.f32 %v2146, %v2147
      %v2149 = vsel %vm811, %v2040, 0.0
      %v2150 = vadd.f32 %v2148, %v2149
      %v2151 = vsel %vm811, %v2044, 0.0
      %v2152 = vadd.f32 %v2150, %v2151
      %v2153 = vsel %vm811, %v2048, 0.0
      %v2154 = vadd.f32 %v2152, %v2153
      %v2155 = vsel %vm811, %v2052, 0.0
      %v2156 = vadd.f32 %v2154, %v2155
      %v2157 = vsel %vm811, %v2056, 0.0
      %v2158 = vadd.f32 %v2156, %v2157
      %v2159 = vsel %vm811, %v2060, 0.0
      %v2160 = vadd.f32 %v2158, %v2159
      %v2161 = vsel %vm811, %v2064, 0.0
      %v2162 = vadd.f32 %v2160, %v2161
      %v2163 = vsel %vm811, %v2068, 0.0
      %v2164 = vadd.f32 %v2162, %v2163
      %v2165 = vsel %vm811, %v2072, 0.0
      %v2166 = vadd.f32 %v2164, %v2165
      %v2167 = vrot.slane %v2166, 4
      %v2168 = vadd.f32 %v2166, %v2167
      %v2169 = vrot.slane %v2168, 2
      %v2170 = vadd.f32 %v2168, %v2169
      %v2171 = vrot.slane %v2170, 1
      %v2172 = vadd.f32 %v2170, %v2171
      %v2173 = vmul.f32 %v2093, %v849
      %v2174 = vmul.f32 %v2114, %v849
      %v2175 = vmul.f32 %v2135, %v849
      %v2176 = vmul.f32 %v2172, %v849
      %v2177 = vmul.f32 %v2005, %v2005
      %v2178 = vmul.f32 %v2006, %v2006
      %v2179 = vmul.f32 %v2007, %v2007
      %v2180 = vmul.f32 %v2008, %v2008
      %v2181 = vsub.f32 %v2173, %v2177
      %v2182 = vsub.f32 %v2174, %v2178
      %v2183 = vsub.f32 %v2175, %v2179
      %v2184 = vsub.f32 %v2176, %v2180
      %v2185 = vadd.f32 %v2181, 1e-05
      %v2186 = vadd.f32 %v2182, 1e-05
      %v2187 = vadd.f32 %v2183, 1e-05
      %v2188 = vadd.f32 %v2184, 1e-05
      %v2189 = vrsqrt.pop %v2185
      %v2190 = vrsqrt.pop %v2186
      %v2191 = vrsqrt.pop %v2187
      %v2192 = vrsqrt.pop %v2188
      %v2193 = vsub.f32 %v1714, %v2005
      %v2194 = vsub.f32 %v1716, %v2006
      %v2195 = vsub.f32 %v1827, %v2007
      %v2196 = vsub.f32 %v1829, %v2008
      %v2197 = vsub.f32 %v1718, %v2005
      %v2198 = vsub.f32 %v1720, %v2006
      %v2199 = vsub.f32 %v1831, %v2007
      %v2200 = vsub.f32 %v1833, %v2008
      %v2201 = vsub.f32 %v1724, %v2005
      %v2202 = vsub.f32 %v1726, %v2006
      %v2203 = vsub.f32 %v1837, %v2007
      %v2204 = vsub.f32 %v1839, %v2008
      %v2205 = vsub.f32 %v1728, %v2005
      %v2206 = vsub.f32 %v1730, %v2006
      %v2207 = vsub.f32 %v1841, %v2007
      %v2208 = vsub.f32 %v1843, %v2008
      %v2209 = vsub.f32 %v1734, %v2005
      %v2210 = vsub.f32 %v1736, %v2006
      %v2211 = vsub.f32 %v1847, %v2007
      %v2212 = vsub.f32 %v1849, %v2008
      %v2213 = vsub.f32 %v1738, %v2005
      %v2214 = vsub.f32 %v1740, %v2006
      %v2215 = vsub.f32 %v1851, %v2007
      %v2216 = vsub.f32 %v1853, %v2008
      %v2217 = vsub.f32 %v1744, %v2005
      %v2218 = vsub.f32 %v1746, %v2006
      %v2219 = vsub.f32 %v1857, %v2007
      %v2220 = vsub.f32 %v1859, %v2008
      %v2221 = vsub.f32 %v1748, %v2005
      %v2222 = vsub.f32 %v1750, %v2006
      %v2223 = vsub.f32 %v1861, %v2007
      %v2224 = vsub.f32 %v1863, %v2008
      %v2225 = vsub.f32 %v1754, %v2005
      %v2226 = vsub.f32 %v1756, %v2006
      %v2227 = vsub.f32 %v1867, %v2007
      %v2228 = vsub.f32 %v1869, %v2008
      %v2229 = vsub.f32 %v1758, %v2005
      %v2230 = vsub.f32 %v1760, %v2006
      %v2231 = vsub.f32 %v1871, %v2007
      %v2232 = vsub.f32 %v1873, %v2008
      %v2233 = vsub.f32 %v1764, %v2005
      %v2234 = vsub.f32 %v1766, %v2006
      %v2235 = vsub.f32 %v1877, %v2007
      %v2236 = vsub.f32 %v1879, %v2008
      %v2237 = vsub.f32 %v1768, %v2005
      %v2238 = vsub.f32 %v1770, %v2006
      %v2239 = vsub.f32 %v1881, %v2007
      %v2240 = vsub.f32 %v1883, %v2008
      %v2241 = vsub.f32 %v1774, %v2005
      %v2242 = vsub.f32 %v1776, %v2006
      %v2243 = vsub.f32 %v1887, %v2007
      %v2244 = vsub.f32 %v1889, %v2008
      %v2245 = vsub.f32 %v1778, %v2005
      %v2246 = vsub.f32 %v1780, %v2006
      %v2247 = vsub.f32 %v1891, %v2007
      %v2248 = vsub.f32 %v1893, %v2008
      %v2249 = vsub.f32 %v1784, %v2005
      %v2250 = vsub.f32 %v1786, %v2006
      %v2251 = vsub.f32 %v1897, %v2007
      %v2252 = vsub.f32 %v1899, %v2008
      %v2253 = vsub.f32 %v1788, %v2005
      %v2254 = vsub.f32 %v1790, %v2006
      %v2255 = vsub.f32 %v1901, %v2007
      %v2256 = vsub.f32 %v1903, %v2008
      %v2257 = vmul.f32 %v2193, %v2189
      %v2258 = vmul.f32 %v2194, %v2190
      %v2259 = vmul.f32 %v2195, %v2191
      %v2260 = vmul.f32 %v2196, %v2192
      %v2261 = vmul.f32 %v2197, %v2189
      %v2262 = vmul.f32 %v2198, %v2190
      %v2263 = vmul.f32 %v2199, %v2191
      %v2264 = vmul.f32 %v2200, %v2192
      %v2265 = vmul.f32 %v2201, %v2189
      %v2266 = vmul.f32 %v2202, %v2190
      %v2267 = vmul.f32 %v2203, %v2191
      %v2268 = vmul.f32 %v2204, %v2192
      %v2269 = vmul.f32 %v2205, %v2189
      %v2270 = vmul.f32 %v2206, %v2190
      %v2271 = vmul.f32 %v2207, %v2191
      %v2272 = vmul.f32 %v2208, %v2192
      %v2273 = vmul.f32 %v2209, %v2189
      %v2274 = vmul.f32 %v2210, %v2190
      %v2275 = vmul.f32 %v2211, %v2191
      %v2276 = vmul.f32 %v2212, %v2192
      %v2277 = vmul.f32 %v2213, %v2189
      %v2278 = vmul.f32 %v2214, %v2190
      %v2279 = vmul.f32 %v2215, %v2191
      %v2280 = vmul.f32 %v2216, %v2192
      %v2281 = vmul.f32 %v2217, %v2189
      %v2282 = vmul.f32 %v2218, %v2190
      %v2283 = vmul.f32 %v2219, %v2191
      %v2284 = vmul.f32 %v2220, %v2192
      %v2285 = vmul.f32 %v2221, %v2189
      %v2286 = vmul.f32 %v2222, %v2190
      %v2287 = vmul.f32 %v2223, %v2191
      %v2288 = vmul.f32 %v2224, %v2192
      %v2289 = vmul.f32 %v2225, %v2189
      %v2290 = vmul.f32 %v2226, %v2190
      %v2291 = vmul.f32 %v2227, %v2191
      %v2292 = vmul.f32 %v2228, %v2192
      %v2293 = vmul.f32 %v2229, %v2189
      %v2294 = vmul.f32 %v2230, %v2190
      %v2295 = vmul.f32 %v2231, %v2191
      %v2296 = vmul.f32 %v2232, %v2192
      %v2297 = vmul.f32 %v2233, %v2189
      %v2298 = vmul.f32 %v2234, %v2190
      %v2299 = vmul.f32 %v2235, %v2191
      %v2300 = vmul.f32 %v2236, %v2192
      %v2301 = vmul.f32 %v2237, %v2189
      %v2302 = vmul.f32 %v2238, %v2190
      %v2303 = vmul.f32 %v2239, %v2191
      %v2304 = vmul.f32 %v2240, %v2192
      %v2305 = vmul.f32 %v2241, %v2189
      %v2306 = vmul.f32 %v2242, %v2190
      %v2307 = vmul.f32 %v2243, %v2191
      %v2308 = vmul.f32 %v2244, %v2192
      %v2309 = vmul.f32 %v2245, %v2189
      %v2310 = vmul.f32 %v2246, %v2190
      %v2311 = vmul.f32 %v2247, %v2191
      %v2312 = vmul.f32 %v2248, %v2192
      %v2313 = vmul.f32 %v2249, %v2189
      %v2314 = vmul.f32 %v2250, %v2190
      %v2315 = vmul.f32 %v2251, %v2191
      %v2316 = vmul.f32 %v2252, %v2192
      %v2317 = vmul.f32 %v2253, %v2189
      %v2318 = vmul.f32 %v2254, %v2190
      %v2319 = vmul.f32 %v2255, %v2191
      %v2320 = vmul.f32 %v2256, %v2192
      %v2321 = vmul.f32 %v2257, %v1169
      %v2322 = vmul.f32 %v2258, %v1169
      %v2323 = vmul.f32 %v2259, %v1169
      %v2324 = vmul.f32 %v2260, %v1169
      %v2325 = vmul.f32 %v2261, %v1174
      %v2326 = vmul.f32 %v2262, %v1174
      %v2327 = vmul.f32 %v2263, %v1174
      %v2328 = vmul.f32 %v2264, %v1174
      %v2329 = vmul.f32 %v2265, %v1179
      %v2330 = vmul.f32 %v2266, %v1179
      %v2331 = vmul.f32 %v2267, %v1179
      %v2332 = vmul.f32 %v2268, %v1179
      %v2333 = vmul.f32 %v2269, %v1184
      %v2334 = vmul.f32 %v2270, %v1184
      %v2335 = vmul.f32 %v2271, %v1184
      %v2336 = vmul.f32 %v2272, %v1184
      %v2337 = vmul.f32 %v2273, %v1189
      %v2338 = vmul.f32 %v2274, %v1189
      %v2339 = vmul.f32 %v2275, %v1189
      %v2340 = vmul.f32 %v2276, %v1189
      %v2341 = vmul.f32 %v2277, %v1194
      %v2342 = vmul.f32 %v2278, %v1194
      %v2343 = vmul.f32 %v2279, %v1194
      %v2344 = vmul.f32 %v2280, %v1194
      %v2345 = vmul.f32 %v2281, %v1199
      %v2346 = vmul.f32 %v2282, %v1199
      %v2347 = vmul.f32 %v2283, %v1199
      %v2348 = vmul.f32 %v2284, %v1199
      %v2349 = vmul.f32 %v2285, %v1204
      %v2350 = vmul.f32 %v2286, %v1204
      %v2351 = vmul.f32 %v2287, %v1204
      %v2352 = vmul.f32 %v2288, %v1204
      %v2353 = vmul.f32 %v2289, %v1209
      %v2354 = vmul.f32 %v2290, %v1209
      %v2355 = vmul.f32 %v2291, %v1209
      %v2356 = vmul.f32 %v2292, %v1209
      %v2357 = vmul.f32 %v2293, %v1214
      %v2358 = vmul.f32 %v2294, %v1214
      %v2359 = vmul.f32 %v2295, %v1214
      %v2360 = vmul.f32 %v2296, %v1214
      %v2361 = vmul.f32 %v2297, %v1219
      %v2362 = vmul.f32 %v2298, %v1219
      %v2363 = vmul.f32 %v2299, %v1219
      %v2364 = vmul.f32 %v2300, %v1219
      %v2365 = vmul.f32 %v2301, %v1224
      %v2366 = vmul.f32 %v2302, %v1224
      %v2367 = vmul.f32 %v2303, %v1224
      %v2368 = vmul.f32 %v2304, %v1224
      %v2369 = vmul.f32 %v2305, %v1229
      %v2370 = vmul.f32 %v2306, %v1229
      %v2371 = vmul.f32 %v2307, %v1229
      %v2372 = vmul.f32 %v2308, %v1229
      %v2373 = vmul.f32 %v2309, %v1234
      %v2374 = vmul.f32 %v2310, %v1234
      %v2375 = vmul.f32 %v2311, %v1234
      %v2376 = vmul.f32 %v2312, %v1234
      %v2377 = vmul.f32 %v2313, %v1239
      %v2378 = vmul.f32 %v2314, %v1239
      %v2379 = vmul.f32 %v2315, %v1239
      %v2380 = vmul.f32 %v2316, %v1239
      %v2381 = vmul.f32 %v2317, %v1244
      %v2382 = vmul.f32 %v2318, %v1244
      %v2383 = vmul.f32 %v2319, %v1244
      %v2384 = vmul.f32 %v2320, %v1244
      %v2385 = vadd.f32 %v2321, %v1313
      %v2386 = vadd.f32 %v2322, %v1313
      %v2387 = vadd.f32 %v2323, %v1313
      %v2388 = vadd.f32 %v2324, %v1313
      %v2389 = vadd.f32 %v2325, %v1318
      %v2390 = vadd.f32 %v2326, %v1318
      %v2391 = vadd.f32 %v2327, %v1318
      %v2392 = vadd.f32 %v2328, %v1318
      %v2393 = vadd.f32 %v2329, %v1323
      %v2394 = vadd.f32 %v2330, %v1323
      %v2395 = vadd.f32 %v2331, %v1323
      %v2396 = vadd.f32 %v2332, %v1323
      %v2397 = vadd.f32 %v2333, %v1328
      %v2398 = vadd.f32 %v2334, %v1328
      %v2399 = vadd.f32 %v2335, %v1328
      %v2400 = vadd.f32 %v2336, %v1328
      %v2401 = vadd.f32 %v2337, %v1333
      %v2402 = vadd.f32 %v2338, %v1333
      %v2403 = vadd.f32 %v2339, %v1333
      %v2404 = vadd.f32 %v2340, %v1333
      %v2405 = vadd.f32 %v2341, %v1338
      %v2406 = vadd.f32 %v2342, %v1338
      %v2407 = vadd.f32 %v2343, %v1338
      %v2408 = vadd.f32 %v2344, %v1338
      %v2409 = vadd.f32 %v2345, %v1343
      %v2410 = vadd.f32 %v2346, %v1343
      %v2411 = vadd.f32 %v2347, %v1343
      %v2412 = vadd.f32 %v2348, %v1343
      %v2413 = vadd.f32 %v2349, %v1348
      %v2414 = vadd.f32 %v2350, %v1348
      %v2415 = vadd.f32 %v2351, %v1348
      %v2416 = vadd.f32 %v2352, %v1348
      %v2417 = vadd.f32 %v2353, %v1353
      %v2418 = vadd.f32 %v2354, %v1353
      %v2419 = vadd.f32 %v2355, %v1353
      %v2420 = vadd.f32 %v2356, %v1353
      %v2421 = vadd.f32 %v2357, %v1358
      %v2422 = vadd.f32 %v2358, %v1358
      %v2423 = vadd.f32 %v2359, %v1358
      %v2424 = vadd.f32 %v2360, %v1358
      %v2425 = vadd.f32 %v2361, %v1363
      %v2426 = vadd.f32 %v2362, %v1363
      %v2427 = vadd.f32 %v2363, %v1363
      %v2428 = vadd.f32 %v2364, %v1363
      %v2429 = vadd.f32 %v2365, %v1368
      %v2430 = vadd.f32 %v2366, %v1368
      %v2431 = vadd.f32 %v2367, %v1368
      %v2432 = vadd.f32 %v2368, %v1368
      %v2433 = vadd.f32 %v2369, %v1373
      %v2434 = vadd.f32 %v2370, %v1373
      %v2435 = vadd.f32 %v2371, %v1373
      %v2436 = vadd.f32 %v2372, %v1373
      %v2437 = vadd.f32 %v2373, %v1378
      %v2438 = vadd.f32 %v2374, %v1378
      %v2439 = vadd.f32 %v2375, %v1378
      %v2440 = vadd.f32 %v2376, %v1378
      %v2441 = vadd.f32 %v2377, %v1383
      %v2442 = vadd.f32 %v2378, %v1383
      %v2443 = vadd.f32 %v2379, %v1383
      %v2444 = vadd.f32 %v2380, %v1383
      %v2445 = vadd.f32 %v2381, %v1388
      %v2446 = vadd.f32 %v2382, %v1388
      %v2447 = vadd.f32 %v2383, %v1388
      %v2448 = vadd.f32 %v2384, %v1388
      %v2449 = vadd.f32 %v2385, %v1583
      %v2450 = vadd.f32 %v2386, %v1584
      %v2451 = vadd.f32 %v2387, %v1585
      %v2452 = vadd.f32 %v2388, %v1586
      %v2453 = vadd.f32 %v2389, %v1587
      %v2454 = vadd.f32 %v2390, %v1588
      %v2455 = vadd.f32 %v2391, %v1589
      %v2456 = vadd.f32 %v2392, %v1590
      %v2457 = vadd.f32 %v2393, %v1591
      %v2458 = vadd.f32 %v2394, %v1592
      %v2459 = vadd.f32 %v2395, %v1593
      %v2460 = vadd.f32 %v2396, %v1594
      %v2461 = vadd.f32 %v2397, %v1595
      %v2462 = vadd.f32 %v2398, %v1596
      %v2463 = vadd.f32 %v2399, %v1597
      %v2464 = vadd.f32 %v2400, %v1598
      %v2465 = vadd.f32 %v2401, %v1599
      %v2466 = vadd.f32 %v2402, %v1600
      %v2467 = vadd.f32 %v2403, %v1601
      %v2468 = vadd.f32 %v2404, %v1602
      %v2469 = vadd.f32 %v2405, %v1603
      %v2470 = vadd.f32 %v2406, %v1604
      %v2471 = vadd.f32 %v2407, %v1605
      %v2472 = vadd.f32 %v2408, %v1606
      %v2473 = vadd.f32 %v2409, %v1607
      %v2474 = vadd.f32 %v2410, %v1608
      %v2475 = vadd.f32 %v2411, %v1609
      %v2476 = vadd.f32 %v2412, %v1610
      %v2477 = vadd.f32 %v2413, %v1611
      %v2478 = vadd.f32 %v2414, %v1612
      %v2479 = vadd.f32 %v2415, %v1613
      %v2480 = vadd.f32 %v2416, %v1614
      %v2481 = vadd.f32 %v2417, %v1615
      %v2482 = vadd.f32 %v2418, %v1616
      %v2483 = vadd.f32 %v2419, %v1617
      %v2484 = vadd.f32 %v2420, %v1618
      %v2485 = vadd.f32 %v2421, %v1619
      %v2486 = vadd.f32 %v2422, %v1620
      %v2487 = vadd.f32 %v2423, %v1621
      %v2488 = vadd.f32 %v2424, %v1622
      %v2489 = vadd.f32 %v2425, %v1623
      %v2490 = vadd.f32 %v2426, %v1624
      %v2491 = vadd.f32 %v2427, %v1625
      %v2492 = vadd.f32 %v2428, %v1626
      %v2493 = vadd.f32 %v2429, %v1627
      %v2494 = vadd.f32 %v2430, %v1628
      %v2495 = vadd.f32 %v2431, %v1629
      %v2496 = vadd.f32 %v2432, %v1630
      %v2497 = vadd.f32 %v2433, %v1631
      %v2498 = vadd.f32 %v2434, %v1632
      %v2499 = vadd.f32 %v2435, %v1633
      %v2500 = vadd.f32 %v2436, %v1634
      %v2501 = vadd.f32 %v2437, %v1635
      %v2502 = vadd.f32 %v2438, %v1636
      %v2503 = vadd.f32 %v2439, %v1637
      %v2504 = vadd.f32 %v2440, %v1638
      %v2505 = vadd.f32 %v2441, %v1639
      %v2506 = vadd.f32 %v2442, %v1640
      %v2507 = vadd.f32 %v2443, %v1641
      %v2508 = vadd.f32 %v2444, %v1642
      %v2509 = vadd.f32 %v2445, %v1643
      %v2510 = vadd.f32 %v2446, %v1644
      %v2511 = vadd.f32 %v2447, %v1645
      %v2512 = vadd.f32 %v2448, %v1646
      %s2513 = scalar_lea.vmem %s231, 512
      %2514 = vst [vmem:[%s2513] sm:$0xff] %v2449
      %2515 = vst [vmem:[%s2513 + $0x8] sm:$0xff] %v2450
      %2516 = vst [vmem:[%s2513 + $0x10] sm:$0xff] %v2451
      %2517 = vst.msk [vmem:[%s2513 + $0x18] sm:$0xff] %vm811, %v2452
      %2518 = vst [vmem:[%s2513 + $0x20] sm:$0xff] %v2453
      %2519 = vst [vmem:[%s2513 + $0x28] sm:$0xff] %v2454
      %2520 = vst [vmem:[%s2513 + $0x30] sm:$0xff] %v2455
      %2521 = vst.msk [vmem:[%s2513 + $0x38] sm:$0xff] %vm811, %v2456
      %2522 = vst [vmem:[%s2513 + $0x40] sm:$0xff] %v2457
      %2523 = vst [vmem:[%s2513 + $0x48] sm:$0xff] %v2458
      %2524 = vst [vmem:[%s2513 + $0x50] sm:$0xff] %v2459
      %2525 = vst.msk [vmem:[%s2513 + $0x58] sm:$0xff] %vm811, %v2460
      %2526 = vst [vmem:[%s2513 + $0x60] sm:$0xff] %v2461
      %2527 = vst [vmem:[%s2513 + $0x68] sm:$0xff] %v2462
      %2528 = vst [vmem:[%s2513 + $0x70] sm:$0xff] %v2463
      %2529 = vst.msk [vmem:[%s2513 + $0x78] sm:$0xff] %vm811, %v2464
      %2530 = vst [vmem:[%s2513 + $0x80] sm:$0xff] %v2465
      %2531 = vst [vmem:[%s2513 + $0x88] sm:$0xff] %v2466
      %2532 = vst [vmem:[%s2513 + $0x90] sm:$0xff] %v2467
      %2533 = vst.msk [vmem:[%s2513 + $0x98] sm:$0xff] %vm811, %v2468
      %2534 = vst [vmem:[%s2513 + $0xa0] sm:$0xff] %v2469
      %2535 = vst [vmem:[%s2513 + $0xa8] sm:$0xff] %v2470
      %2536 = vst [vmem:[%s2513 + $0xb0] sm:$0xff] %v2471
      %2537 = vst.msk [vmem:[%s2513 + $0xb8] sm:$0xff] %vm811, %v2472
      %2538 = vst [vmem:[%s2513 + $0xc0] sm:$0xff] %v2473
      %2539 = vst [vmem:[%s2513 + $0xc8] sm:$0xff] %v2474
      %2540 = vst [vmem:[%s2513 + $0xd0] sm:$0xff] %v2475
      %2541 = vst.msk [vmem:[%s2513 + $0xd8] sm:$0xff] %vm811, %v2476
      %2542 = vst [vmem:[%s2513 + $0xe0] sm:$0xff] %v2477
      %2543 = vst [vmem:[%s2513 + $0xe8] sm:$0xff] %v2478
      %2544 = vst [vmem:[%s2513 + $0xf0] sm:$0xff] %v2479
      %2545 = vst.msk [vmem:[%s2513 + $0xf8] sm:$0xff] %vm811, %v2480
      %2546 = vst [vmem:[%s2513 + $0x100] sm:$0xff] %v2481
      %2547 = vst [vmem:[%s2513 + $0x108] sm:$0xff] %v2482
      %2548 = vst [vmem:[%s2513 + $0x110] sm:$0xff] %v2483
      %2549 = vst.msk [vmem:[%s2513 + $0x118] sm:$0xff] %vm811, %v2484
      %2550 = vst [vmem:[%s2513 + $0x120] sm:$0xff] %v2485
      %2551 = vst [vmem:[%s2513 + $0x128] sm:$0xff] %v2486
      %2552 = vst [vmem:[%s2513 + $0x130] sm:$0xff] %v2487
      %2553 = vst.msk [vmem:[%s2513 + $0x138] sm:$0xff] %vm811, %v2488
      %2554 = vst [vmem:[%s2513 + $0x140] sm:$0xff] %v2489
      %2555 = vst [vmem:[%s2513 + $0x148] sm:$0xff] %v2490
      %2556 = vst [vmem:[%s2513 + $0x150] sm:$0xff] %v2491
      %2557 = vst.msk [vmem:[%s2513 + $0x158] sm:$0xff] %vm811, %v2492
      %2558 = vst [vmem:[%s2513 + $0x160] sm:$0xff] %v2493
      %2559 = vst [vmem:[%s2513 + $0x168] sm:$0xff] %v2494
      %2560 = vst [vmem:[%s2513 + $0x170] sm:$0xff] %v2495
      %2561 = vst.msk [vmem:[%s2513 + $0x178] sm:$0xff] %vm811, %v2496
      %2562 = vst [vmem:[%s2513 + $0x180] sm:$0xff] %v2497
      %2563 = vst [vmem:[%s2513 + $0x188] sm:$0xff] %v2498
      %2564 = vst [vmem:[%s2513 + $0x190] sm:$0xff] %v2499
      %2565 = vst.msk [vmem:[%s2513 + $0x198] sm:$0xff] %vm811, %v2500
      %2566 = vst [vmem:[%s2513 + $0x1a0] sm:$0xff] %v2501
      %2567 = vst [vmem:[%s2513 + $0x1a8] sm:$0xff] %v2502
      %2568 = vst [vmem:[%s2513 + $0x1b0] sm:$0xff] %v2503
      %2569 = vst.msk [vmem:[%s2513 + $0x1b8] sm:$0xff] %vm811, %v2504
      %2570 = vst [vmem:[%s2513 + $0x1c0] sm:$0xff] %v2505
      %2571 = vst [vmem:[%s2513 + $0x1c8] sm:$0xff] %v2506
      %2572 = vst [vmem:[%s2513 + $0x1d0] sm:$0xff] %v2507
      %2573 = vst.msk [vmem:[%s2513 + $0x1d8] sm:$0xff] %vm811, %v2508
      %2574 = vst [vmem:[%s2513 + $0x1e0] sm:$0xff] %v2509
      %2575 = vst [vmem:[%s2513 + $0x1e8] sm:$0xff] %v2510
      %2576 = vst [vmem:[%s2513 + $0x1f0] sm:$0xff] %v2511
      %2577 = vst.msk [vmem:[%s2513 + $0x1f8] sm:$0xff] %vm811, %v2512
      %s2578 = smul.u32 2, %s16
      %p2579 = scmp.lt.s32.totalorder %s2578, 3
      %s2580 = scalar_select %p2579, %s2578, 3
      %s2581 = smul.addr %s2580, 64
      %s2582 = smul.addr %s2581, 8
      %s2583 = scalar_lea.vmem %s5, %s2582
      // Predicated region
      $region41: #{tpu_custom_call.1} parent=39 // pred_check
        %p2584 = pneg %p144
      $region42: #{tpu_custom_call.1} parent=39 // pred_check_branch
        %2586 = sbr.rel (%p2584) target = $region44
      $region43: #{tpu_custom_call.1} parent=39 // pred_region
        %s2587 = smul.u32 2, %s16
      $region44: #{tpu_custom_call.1} parent=39 // pred_fallthru
        _
    $region40: #{tpu_custom_call.1} parent=5 // pred_fallthru
      _
    %p2588 = scmp.le.s32.totalorder 2, %s11
    // Predicated region
    $region45: #{tpu_custom_call.1} parent=5 // pred_check
      %p2589 = pneg %p2588
    $region46: #{tpu_custom_call.1} parent=5 // pred_check_branch
      %2591 = sbr.rel (%p2589) target = $region48
    $region47: #{tpu_custom_call.1} parent=5 // pred_region
      %s2592 = ssub.s32 %s11, 2
      // Predicated region
      $region49: #{tpu_custom_call.1} parent=47 // pred_check
        %p2593 = pneg %p150
      $region50: #{tpu_custom_call.1} parent=47 // pred_check_branch
        %2595 = sbr.rel (%p2593) target = $region52
      $region51: #{tpu_custom_call.1} parent=47 // pred_region
        %s2596 = smul.u32 2, %s17
        %p2597 = scmp.lt.s32.totalorder %s2596, 3
        %s2598 = scalar_select %p2597, %s2596, 3
        %s2599 = smul.addr %s2598, 64
        %s2600 = smul.addr %s2599, 8
        %s2601 = scalar_lea.vmem %s5, %s2600
      $region52: #{tpu_custom_call.1} parent=47 // pred_fallthru
        _
    $region48: #{tpu_custom_call.1} parent=5 // pred_fallthru
      _
  $region6: #{tpu_custom_call.1} parent=0 // loop_footer
    %s15 = sadd.s32 1, %s11
  $region7: #{tpu_custom_call.1} parent=0 // loop_footer_branch
    %10 = sbr.rel target = $region3
  $region8: #{tpu_custom_call.1} parent=0 // loop_exit
    _

</llo_original>
